<compile_context>
chip_gen: v7x
topology: tpu7x:2x2x1
jax: 0.10.0
libtpu: 0.0.40
codegen_flags: <defaults>
</compile_context>

<pallas_src>
import functools

import jax
import jax.numpy as jnp
from jax.experimental import pallas as pl
from jax.experimental.pallas import tpu as pltpu


# ----------------------------- Pallas kernel ------------------------------ #
def vit_block_kernel(x_ref,
                     g1_ref, be1_ref,
                     wq_ref, bq_ref,
                     wkv_ref, bkv_ref,
                     wproj_ref, bproj_ref,
                     g2_ref, be2_ref,
                     w1_ref, bfc1_ref,
                     w2_ref, bfc2_ref,
                     o_ref,
                     kv_ref, ln1_ref,
                     *, num_heads, tile_n, gelu_approx):
    N, D = ln1_ref.shape
    hd = D // num_heads
    eps = 1e-6
    cdt = jnp.bfloat16                      # MXU operand dtype (f32 accumulation)

    def layernorm(t, g, b):
        mu = jnp.mean(t, axis=-1, keepdims=True)
        var = jnp.mean((t - mu) ** 2, axis=-1, keepdims=True)
        return (t - mu) * jax.lax.rsqrt(var + eps) * g + b

    t_id = pl.program_id(1)

    # ---- token tile 0: build LN1(x) and K|V for this batch element ----------
    # (bf16 scratches persist across the inner "arbitrary" grid axis, so later
    #  query tiles of the same batch element reuse them.)
    @pl.when(t_id == 0)
    def _():
        xf = x_ref[0]                                             # (N, D) f32
        xn = layernorm(xf, g1_ref[...], be1_ref[...]).astype(cdt)
        ln1_ref[...] = xn                                         # cached LN1(x)
        # fused K|V projection: one wide MXU pass, one lane-dense store
        kv = jnp.dot(xn, wkv_ref[...],
                     preferred_element_type=jnp.float32) + bkv_ref[...]
        kv_ref[...] = kv.astype(cdt)                              # (N, 2D) bf16

    # ---------------------------- query tile ---------------------------------
    start = pl.multiple_of(t_id * tile_n, tile_n)
    xq = x_ref[0, pl.ds(start, tile_n), :]                        # (Tn, D) f32 residual
    xnq = ln1_ref[pl.ds(start, tile_n), :]                        # (Tn, D) bf16 (cached)
    # wq / bq were pre-scaled by 1/sqrt(head_dim) at init -> no O(N^2) scaling.
    q = (jnp.dot(xnq, wq_ref[...], preferred_element_type=jnp.float32)
         + bq_ref[...]).astype(cdt)                               # (Tn, D)

    # Per-head attention.  Softmax normalization is applied AFTER the PV
    # matmul; head outputs are concatenated in registers (lane-dense value
    # feeding the projection matmul — no masked scratch stores).
    head_outs = []
    for h in range(num_heads):
        lo, hi = h * hd, (h + 1) * hd
        qh = q[:, lo:hi]                                          # (Tn, hd) bf16
        kh = kv_ref[:, lo:hi]                                     # (N,  hd) bf16
        vh = kv_ref[:, D + lo:D + hi]                             # (N,  hd) bf16
        # contract over the shared head_dim axis — no explicit transpose
        s = jax.lax.dot_general(qh, kh,
                                dimension_numbers=(((1,), (1,)), ((), ())),
                                preferred_element_type=jnp.float32)  # (Tn, N)
        s = s - jnp.max(s, axis=-1, keepdims=True)
        p = jnp.exp(s)
        inv = pl.reciprocal(jnp.sum(p, axis=-1, keepdims=True), approx=True)
        o_h = jnp.dot(p.astype(cdt), vh,
                      preferred_element_type=jnp.float32)         # (Tn, hd)
        head_outs.append(o_h * inv)                               # post-PV norm
    attn = jnp.concatenate(head_outs, axis=-1).astype(cdt)        # (Tn, D)

    # --- output projection + residual ---
    attn_out = jnp.dot(attn, wproj_ref[...],
                       preferred_element_type=jnp.float32) + bproj_ref[...]
    x = xq + attn_out

    # --- LayerNorm 2 + MLP (fc1 -> GELU -> fc2) + residual ---
    xn2 = layernorm(x, g2_ref[...], be2_ref[...]).astype(cdt)
    hmid = jnp.dot(xn2, w1_ref[...],
                   preferred_element_type=jnp.float32) + bfc1_ref[...]
    # tanh GELU by default (EUP path, idle during the MLP phase); the bf16
    # weights already set the error floor, so parity vs torch's erf GELU holds
    # under the test tolerance.  Pass gelu_approx=False for exact erf.
    hmid = jax.nn.gelu(hmid, approximate=gelu_approx).astype(cdt)
    y = jnp.dot(hmid, w2_ref[...],
                preferred_element_type=jnp.float32) + bfc2_ref[...]

    o_ref[0] = (x + y).astype(o_ref.dtype)


# ------------------------------ wrapper ----------------------------------- #
def _pick_token_tile(N, D, H, max_tile=None, tmp_budget=8 << 20):
    """Largest candidate tile that divides N (VMEM-aware cap on temporaries)."""
    cands = [c for c in (512, 256, 128, 64, 32, 16, 8) if c <= N and N % c == 0]
    if not cands:
        return N
    if max_tile is not None:
        capped = [c for c in cands if c <= max_tile]
        cands = capped if capped else cands[-1:]
    for cand in cands:
        # (Tn, N) f32 softmax temporaries + (Tn, H) MLP intermediate + slack
        tmp = cand * N * 4 * 3 + cand * H * 4 * 2 + cand * D * 4 * 4
        if tmp <= tmp_budget:
            return cand
    return cands[-1]


def _vmem_limit_bytes(N, D, H, tile_n, single_buffer):
    """Shape-derived scoped-VMEM budget, capped by physical VMEM when known."""
    bf2, f4 = 2, 4
    w_bytes = (D * D + D * 2 * D + D * D + D * H + H * D) * bf2   # bf16 weights
    w_bytes += (7 * D + H + 2 * D) * f4                           # biases + LN params
    wbuf = 1 if single_buffer else 2
    x_full = N * D * f4 * (1 if single_buffer else 2)             # full-seq x
    io_tiles = 2 * tile_n * D * f4 * 2                            # out tile (dbl-buf) + slack
    scratch = N * 2 * D * bf2 + N * D * bf2                       # K|V + LN1 caches (bf16)
    temps = tile_n * N * f4 * 4 + tile_n * H * f4 * 3 + tile_n * D * f4 * 6
    need = int((wbuf * w_bytes + x_full + io_tiles + scratch + temps) * 1.3) + (8 << 20)
    try:
        cap = int(pltpu.get_tpu_info().vmem_capacity_bytes * 0.85)
    except Exception:
        cap = int((64 << 20) * 0.85)   # conservative (v7x physical VMEM)
    return max(32 << 20, min(need, cap))


def _vit_block_call(x, kp, num_heads, gelu_approx, single_buffer, max_tile_n):
    B, N, D = x.shape
    H = kp["w1"].shape[1]
    tile_n = _pick_token_tile(N, D, H, max_tile=max_tile_n)
    n_tiles = N // tile_n

    def const_spec(shape):
        # Constant index_map -> the block never changes across the grid; a
        # single resident buffer suffices (halves weight VMEM vs. default).
        idx = lambda b, t: (0,) * len(shape)
        if single_buffer:
            return pl.BlockSpec(shape, idx, pipeline_mode=pl.Buffered(1))
        return pl.BlockSpec(shape, idx)

    def x_spec():
        idx = lambda b, t: (b, 0, 0)
        if single_buffer:
            return pl.BlockSpec((1, N, D), idx, pipeline_mode=pl.Buffered(1))
        return pl.BlockSpec((1, N, D), idx)

    in_specs = [
        x_spec(),                                               # full-seq x (single input)
        const_spec((1, D)), const_spec((1, D)),                 # ln1 gamma/beta
        const_spec((D, D)), const_spec((1, D)),                 # wq (pre-scaled), bq
        const_spec((D, 2 * D)), const_spec((1, 2 * D)),         # fused wk|wv, bk|bv
        const_spec((D, D)), const_spec((1, D)),                 # proj W/b
        const_spec((1, D)), const_spec((1, D)),                 # ln2 gamma/beta
        const_spec((D, H)), const_spec((1, H)),                 # fc1 W/b
        const_spec((H, D)), const_spec((1, D)),                 # fc2 W/b
    ]
    out_spec = pl.BlockSpec((1, tile_n, D), lambda b, t: (b, t, 0))

    kernel = functools.partial(vit_block_kernel, num_heads=num_heads,
                               tile_n=tile_n, gelu_approx=gelu_approx)

    return pl.pallas_call(
        kernel,
        out_shape=jax.ShapeDtypeStruct((B, N, D), jnp.float32),
        grid=(B, n_tiles),
        in_specs=in_specs,
        out_specs=out_spec,
        scratch_shapes=[
            pltpu.VMEM((N, 2 * D), jnp.bfloat16),   # cached K|V (bf16)
            pltpu.VMEM((N, D), jnp.bfloat16),       # cached LN1(x) (bf16)
        ],
        compiler_params=pltpu.CompilerParams(
            dimension_semantics=("parallel", "arbitrary"),
            vmem_limit_bytes=_vmem_limit_bytes(N, D, H, tile_n, single_buffer),
        ),
    )(x,
      kp["g1"], kp["be1"],
      kp["wq"], kp["bq"],
      kp["wkv"], kp["bkv"],
      kp["wproj"], kp["bproj"],
      kp["g2"], kp["be2"],
      kp["w1"], kp["bfc1"],
      kp["w2"], kp["bfc2"])


def vit_block_pallas(x, kernel_params, num_heads, gelu_approx=True,
                     max_tile_n=None):
    try:
        return _vit_block_call(x, kernel_params, num_heads, gelu_approx,
                               single_buffer=True, max_tile_n=max_tile_n)
    except Exception as e:
        # Narrowed fallback: only retry with default buffering if this jax
        # build rejects single-buffered (pl.Buffered(1)) block specs; any
        # other lowering / OOM error propagates.
        msg = str(e).lower()
        if ("buffered" in msg) or ("buffer" in msg) or ("pipeline" in msg):
            return _vit_block_call(x, kernel_params, num_heads, gelu_approx,
                                   single_buffer=False, max_tile_n=max_tile_n)
        raise


# --------------------- plain-JAX reference (for checking) ----------------- #
def vit_block_ref(x, p, num_heads):
    def ln(t, g, b):
        mu = t.mean(-1, keepdims=True)
        var = ((t - mu) ** 2).mean(-1, keepdims=True)
        return (t - mu) / jnp.sqrt(var + 1e-6) * g + b

    B, N, D = x.shape
    hd = D // num_heads
    xn = ln(x, p["g1"], p["be1"])
    qkv = xn @ p["wqkv"] + p["bqkv"]                          # (B,N,3D)
    q, k, v = jnp.split(qkv, 3, axis=-1)
    q = q.reshape(B, N, num_heads, hd).transpose(0, 2, 1, 3)
    k = k.reshape(B, N, num_heads, hd).transpose(0, 2, 1, 3)
    v = v.reshape(B, N, num_heads, hd).transpose(0, 2, 1, 3)
    s = jnp.einsum("bhqd,bhkd->bhqk", q, k) / (hd ** 0.5)
    a = jax.nn.softmax(s, axis=-1)
    o = jnp.einsum("bhqk,bhkd->bhqd", a, v).transpose(0, 2, 1, 3).reshape(B, N, D)
    x = x + (o @ p["wproj"] + p["bproj"])
    xn2 = ln(x, p["g2"], p["be2"])
    h = jax.nn.gelu(xn2 @ p["w1"] + p["bfc1"], approximate=False)
    return x + (h @ p["w2"] + p["bfc2"])


# ------------------------- param init & AdaptLayers ----------------------- #
def init_block_params(key, D, num_heads, mlp_ratio=4):
    """Torch-like f32 parameters (source of truth for the reference)."""
    H = D * mlp_ratio
    ks = jax.random.split(key, 6)
    s = 0.02
    return {
        "g1": jnp.ones((1, D), jnp.float32),
        "be1": jnp.zeros((1, D), jnp.float32),
        "wqkv": s * jax.random.normal(ks[0], (D, 3 * D), jnp.float32),
        "bqkv": s * jax.random.normal(ks[1], (1, 3 * D), jnp.float32),
        "wproj": s * jax.random.normal(ks[2], (D, D), jnp.float32),
        "bproj": jnp.zeros((1, D), jnp.float32),
        "g2": jnp.ones((1, D), jnp.float32),
        "be2": jnp.zeros((1, D), jnp.float32),
        "w1": s * jax.random.normal(ks[3], (D, H), jnp.float32),
        "bfc1": s * jax.random.normal(ks[4], (1, H), jnp.float32),
        "w2": s * jax.random.normal(ks[5], (H, D), jnp.float32),
        "bfc2": jnp.zeros((1, D), jnp.float32),
    }


def prepare_kernel_params(p, num_heads):
    """Split Q from a fused K|V, bake 1/sqrt(head_dim) into Q, cast to bf16."""
    D = p["wqkv"].shape[0]
    assert D % num_heads == 0
    scale = 1.0 / ((D // num_heads) ** 0.5)
    wq, wk, wv = jnp.split(p["wqkv"], 3, axis=1)
    bq, bk, bv = jnp.split(p["bqkv"], 3, axis=1)
    wdt = jnp.bfloat16
    return {
        "g1": p["g1"], "be1": p["be1"],
        "wq": (wq * scale).astype(wdt),
        "bq": (bq * scale).astype(jnp.float32),
        "wkv": jnp.concatenate([wk, wv], axis=1).astype(wdt),   # fused (D, 2D)
        "bkv": jnp.concatenate([bk, bv], axis=1).astype(jnp.float32),
        "wproj": p["wproj"].astype(wdt), "bproj": p["bproj"],
        "g2": p["g2"], "be2": p["be2"],
        "w1": p["w1"].astype(wdt), "bfc1": p["bfc1"],
        "w2": p["w2"].astype(wdt), "bfc2": p["bfc2"],
    }


class AdaptLayersPallas:
    """One ViT-block adaptation layer per hypercolumn extraction point."""

    def __init__(self, num_layers, dim, num_heads, key,
                 gelu_approx=True, max_tile_n=None):
        keys = jax.random.split(key, num_layers)
        self.num_heads = num_heads
        self.gelu_approx = gelu_approx
        self.max_tile_n = max_tile_n
        self.raw_params = [init_block_params(k, dim, num_heads) for k in keys]
        self.kernel_params = [prepare_kernel_params(p, num_heads)
                              for p in self.raw_params]

    def __call__(self, features):
        return [vit_block_pallas(f, kp, self.num_heads,
                                 gelu_approx=self.gelu_approx,
                                 max_tile_n=self.max_tile_n)
                for f, kp in zip(features, self.kernel_params)]

    def reference(self, features):
        return [vit_block_ref(f, p, self.num_heads)
                for f, p in zip(features, self.raw_params)]


# --------------------------------- main ------------------------------------ #
if __name__ == "__main__":
    # Small demo shapes.  max_tile_n=16 with N=32 forces a 2-tile token axis so
    # the cached K/V + LN1 scratch path (t_id > 0) is exercised; real ViT dims
    # (D >= 128) map much better onto the 128-lane vregs / MXU.
    B, N, D, num_heads = 2, 32, 32, 4
    num_hyper_layers = 2

    root = jax.random.PRNGKey(0)
    k_params, k_feat0, k_feat1 = jax.random.split(root, 3)

    features = [
        jax.random.normal(k_feat0, (B, N, D), jnp.float32),
        jax.random.normal(k_feat1, (B, N, D), jnp.float32),
    ]

    adapt = AdaptLayersPallas(num_hyper_layers, D, num_heads, k_params,
                              gelu_approx=True, max_tile_n=16)

    outs = adapt(features)
    outs = [jax.block_until_ready(o) for o in outs]

    refs = adapt.reference(features)
    for o, r in zip(outs, refs):
        assert o.shape == (B, N, D)
        # bf16 weights / MXU operands + tanh GELU + approx reciprocal in the
        # kernel vs. pure-f32 erf-GELU reference -> loosened tolerance.
        assert jnp.allclose(o, r, atol=2e-2, rtol=2e-2), "mismatch vs JAX reference"

    print("KERNEL_OK")
</pallas_src>

<mosaic_0001>
module attributes {stable_mosaic.version = 11 : i64} {
  func.func @vit_block_kernel(%arg0: i32, %arg1: i32, %arg2: memref<1x32x32xf32, #tpu.memory_space<vmem>>, %arg3: memref<1x32xf32, #tpu.memory_space<vmem>>, %arg4: memref<1x32xf32, #tpu.memory_space<vmem>>, %arg5: memref<32x32xbf16, #tpu.memory_space<vmem>>, %arg6: memref<1x32xf32, #tpu.memory_space<vmem>>, %arg7: memref<32x64xbf16, #tpu.memory_space<vmem>>, %arg8: memref<1x64xf32, #tpu.memory_space<vmem>>, %arg9: memref<32x32xbf16, #tpu.memory_space<vmem>>, %arg10: memref<1x32xf32, #tpu.memory_space<vmem>>, %arg11: memref<1x32xf32, #tpu.memory_space<vmem>>, %arg12: memref<1x32xf32, #tpu.memory_space<vmem>>, %arg13: memref<32x128xbf16, #tpu.memory_space<vmem>>, %arg14: memref<1x128xf32, #tpu.memory_space<vmem>>, %arg15: memref<128x32xbf16, #tpu.memory_space<vmem>>, %arg16: memref<1x32xf32, #tpu.memory_space<vmem>>, %arg17: memref<1x16x32xf32, #tpu.memory_space<vmem>>, %arg18: memref<32x64xbf16, #tpu.memory_space<vmem>>, %arg19: memref<32x32xbf16, #tpu.memory_space<vmem>>) attributes {dimension_semantics = [#tpu.dimension_semantics<parallel>, #tpu.dimension_semantics<arbitrary>], iteration_bounds = array<i64: 2, 2>, scalar_prefetch = 0 : i64, scratch_operands = 2 : i64, tpu.core_type = #tpu.core_type<tc>, window_params = [{pipeline_mode = #tpu.pipeline_mode<synchronous>, transform_indices = @transform_0, window_bounds = array<i64: 1, 32, 32>}, {pipeline_mode = #tpu.pipeline_mode<synchronous>, transform_indices = @transform_1, window_bounds = array<i64: 1, 32>}, {pipeline_mode = #tpu.pipeline_mode<synchronous>, transform_indices = @transform_2, window_bounds = array<i64: 1, 32>}, {pipeline_mode = #tpu.pipeline_mode<synchronous>, transform_indices = @transform_3, window_bounds = array<i64: 32, 32>}, {pipeline_mode = #tpu.pipeline_mode<synchronous>, transform_indices = @transform_4, window_bounds = array<i64: 1, 32>}, {pipeline_mode = #tpu.pipeline_mode<synchronous>, transform_indices = @transform_5, window_bounds = array<i64: 32, 64>}, {pipeline_mode = #tpu.pipeline_mode<synchronous>, transform_indices = @transform_6, window_bounds = array<i64: 1, 64>}, {pipeline_mode = #tpu.pipeline_mode<synchronous>, transform_indices = @transform_7, window_bounds = array<i64: 32, 32>}, {pipeline_mode = #tpu.pipeline_mode<synchronous>, transform_indices = @transform_8, window_bounds = array<i64: 1, 32>}, {pipeline_mode = #tpu.pipeline_mode<synchronous>, transform_indices = @transform_9, window_bounds = array<i64: 1, 32>}, {pipeline_mode = #tpu.pipeline_mode<synchronous>, transform_indices = @transform_10, window_bounds = array<i64: 1, 32>}, {pipeline_mode = #tpu.pipeline_mode<synchronous>, transform_indices = @transform_11, window_bounds = array<i64: 32, 128>}, {pipeline_mode = #tpu.pipeline_mode<synchronous>, transform_indices = @transform_12, window_bounds = array<i64: 1, 128>}, {pipeline_mode = #tpu.pipeline_mode<synchronous>, transform_indices = @transform_13, window_bounds = array<i64: 128, 32>}, {pipeline_mode = #tpu.pipeline_mode<synchronous>, transform_indices = @transform_14, window_bounds = array<i64: 1, 32>}, {transform_indices = @transform_15, window_bounds = array<i64: 1, 16, 32>}]} {
    %c0_i32 = arith.constant 0 : i32
    %0 = arith.cmpi eq, %arg1, %c0_i32 : i32
    %1 = arith.extui %0 : i1 to i32
    %c0_i32_0 = arith.constant 0 : i32
    %2 = arith.cmpi ne, %1, %c0_i32_0 : i32
    scf.if %2 {
      %c0_63 = arith.constant 0 : index
      %c0_64 = arith.constant 0 : index
      %c0_65 = arith.constant 0 : index
      %141 = vector.load %arg2[%c0_63, %c0_64, %c0_65] : memref<1x32x32xf32, #tpu.memory_space<vmem>>, vector<1x32x32xf32>
      %142 = vector.shape_cast %141 : vector<1x32x32xf32> to vector<32x32xf32>
      %c0_66 = arith.constant 0 : index
      %c0_67 = arith.constant 0 : index
      %143 = vector.load %arg3[%c0_66, %c0_67] : memref<1x32xf32, #tpu.memory_space<vmem>>, vector<1x32xf32>
      %c0_68 = arith.constant 0 : index
      %c0_69 = arith.constant 0 : index
      %144 = vector.load %arg4[%c0_68, %c0_69] : memref<1x32xf32, #tpu.memory_space<vmem>>, vector<1x32xf32>
      %cst_70 = arith.constant dense<0.000000e+00> : vector<32xf32>
      %145 = vector.multi_reduction <add>, %142, %cst_70 [1] : vector<32x32xf32> to vector<32xf32>
      %146 = vector.shape_cast %145 : vector<32xf32> to vector<32x1xf32>
      %cst_71 = arith.constant 3.200000e+01 : f32
      %147 = vector.broadcast %cst_71 : f32 to vector<32x1xf32>
      %148 = arith.divf %146, %147 : vector<32x1xf32>
      %149 = vector.broadcast %148 : vector<32x1xf32> to vector<32x32xf32>
      %150 = arith.subf %142, %149 : vector<32x32xf32>
      %151 = arith.mulf %150, %150 : vector<32x32xf32>
      %cst_72 = arith.constant dense<0.000000e+00> : vector<32xf32>
      %152 = vector.multi_reduction <add>, %151, %cst_72 [1] : vector<32x32xf32> to vector<32xf32>
      %153 = vector.shape_cast %152 : vector<32xf32> to vector<32x1xf32>
      %cst_73 = arith.constant 3.200000e+01 : f32
      %154 = vector.broadcast %cst_73 : f32 to vector<32x1xf32>
      %155 = arith.divf %153, %154 : vector<32x1xf32>
      %156 = vector.broadcast %148 : vector<32x1xf32> to vector<32x32xf32>
      %157 = arith.subf %142, %156 : vector<32x32xf32>
      %cst_74 = arith.constant 9.99999997E-7 : f32
      %158 = vector.broadcast %cst_74 : f32 to vector<32x1xf32>
      %159 = arith.addf %155, %158 : vector<32x1xf32>
      %160 = math.rsqrt %159 : vector<32x1xf32>
      %161 = vector.broadcast %160 : vector<32x1xf32> to vector<32x32xf32>
      %162 = arith.mulf %157, %161 : vector<32x32xf32>
      %163 = vector.broadcast %143 : vector<1x32xf32> to vector<32x32xf32>
      %164 = arith.mulf %162, %163 : vector<32x32xf32>
      %165 = vector.broadcast %144 : vector<1x32xf32> to vector<32x32xf32>
      %166 = arith.addf %164, %165 : vector<32x32xf32>
      %167 = arith.truncf %166 : vector<32x32xf32> to vector<32x32xbf16>
      %c0_75 = arith.constant 0 : index
      %c0_76 = arith.constant 0 : index
      %168 = vector.load %arg19[%c0_75, %c0_76] : memref<32x32xbf16, #tpu.memory_space<vmem>>, vector<32x32xbf16>
      tpu.vector_store %arg19[%c0_75, %c0_76], %167 {strides = array<i32>} : memref<32x32xbf16, #tpu.memory_space<vmem>>, vector<32x32xbf16>,
      %c0_77 = arith.constant 0 : index
      %c0_78 = arith.constant 0 : index
      %169 = vector.load %arg7[%c0_77, %c0_78] : memref<32x64xbf16, #tpu.memory_space<vmem>>, vector<32x64xbf16>
      %cst_79 = arith.constant dense<0.000000e+00> : vector<32x64xf32>
      %170 = tpu.matmul %167, %169, %cst_79 {dimension_numbers = #tpu.dot_dimension_numbers<[1], [0], [0], [1], [0, 0, 1, 1], [], []>} : vector<32x32xbf16>, vector<32x64xbf16>, vector<32x64xf32> -> vector<32x64xf32>
      %c0_80 = arith.constant 0 : index
      %c0_81 = arith.constant 0 : index
      %171 = vector.load %arg8[%c0_80, %c0_81] : memref<1x64xf32, #tpu.memory_space<vmem>>, vector<1x64xf32>
      %172 = vector.broadcast %171 : vector<1x64xf32> to vector<32x64xf32>
      %173 = arith.addf %170, %172 : vector<32x64xf32>
      %174 = arith.truncf %173 : vector<32x64xf32> to vector<32x64xbf16>
      %c0_82 = arith.constant 0 : index
      %c0_83 = arith.constant 0 : index
      %175 = vector.load %arg18[%c0_82, %c0_83] : memref<32x64xbf16, #tpu.memory_space<vmem>>, vector<32x64xbf16>
      tpu.vector_store %arg18[%c0_82, %c0_83], %174 {strides = array<i32>} : memref<32x64xbf16, #tpu.memory_space<vmem>>, vector<32x64xbf16>,
    } else {
    }
    %c16_i32 = arith.constant 16 : i32
    %3 = arith.muli %arg1, %c16_i32 : i32
    %4 = tpu.assume_multiple %3, 16 : i32
    %c0 = arith.constant 0 : index
    %5 = arith.index_cast %4 : i32 to index
    %c0_1 = arith.constant 0 : index
    %6 = vector.load %arg2[%c0, %5, %c0_1] : memref<1x32x32xf32, #tpu.memory_space<vmem>>, vector<1x16x32xf32>
    %7 = vector.shape_cast %6 : vector<1x16x32xf32> to vector<16x32xf32>
    %8 = arith.index_cast %4 : i32 to index
    %c0_2 = arith.constant 0 : index
    %9 = vector.load %arg19[%8, %c0_2] : memref<32x32xbf16, #tpu.memory_space<vmem>>, vector<16x32xbf16>
    %c0_3 = arith.constant 0 : index
    %c0_4 = arith.constant 0 : index
    %10 = vector.load %arg5[%c0_3, %c0_4] : memref<32x32xbf16, #tpu.memory_space<vmem>>, vector<32x32xbf16>
    %cst = arith.constant dense<0.000000e+00> : vector<16x32xf32>
    %11 = tpu.matmul %9, %10, %cst {dimension_numbers = #tpu.dot_dimension_numbers<[1], [0], [0], [1], [0, 0, 1, 1], [], []>} : vector<16x32xbf16>, vector<32x32xbf16>, vector<16x32xf32> -> vector<16x32xf32>
    %c0_5 = arith.constant 0 : index
    %c0_6 = arith.constant 0 : index
    %12 = vector.load %arg6[%c0_5, %c0_6] : memref<1x32xf32, #tpu.memory_space<vmem>>, vector<1x32xf32>
    %13 = vector.broadcast %12 : vector<1x32xf32> to vector<16x32xf32>
    %14 = arith.addf %11, %13 : vector<16x32xf32>
    %15 = arith.truncf %14 : vector<16x32xf32> to vector<16x32xbf16>
    %16 = vector.extract_strided_slice %15 {offsets = [0, 0], sizes = [16, 8], strides = [1, 1]} : vector<16x32xbf16> to vector<16x8xbf16>
    %c0_7 = arith.constant 0 : index
    %c0_8 = arith.constant 0 : index
    %17 = vector.load %arg18[%c0_7, %c0_8] : memref<32x64xbf16, #tpu.memory_space<vmem>>, vector<32x8xbf16>
    %c0_9 = arith.constant 0 : index
    %c32 = arith.constant 32 : index
    %18 = vector.load %arg18[%c0_9, %c32] : memref<32x64xbf16, #tpu.memory_space<vmem>>, vector<32x8xbf16>
    %cst_10 = arith.constant dense<0.000000e+00> : vector<16x32xf32>
    %19 = tpu.matmul %16, %17, %cst_10 {dimension_numbers = #tpu.dot_dimension_numbers<[1], [1], [0], [0], [0, 0, 1, 0], [], []>} : vector<16x8xbf16>, vector<32x8xbf16>, vector<16x32xf32> -> vector<16x32xf32>
    %cst_11 = arith.constant dense<0xFF800000> : vector<16xf32>
    %20 = vector.multi_reduction <maximumf>, %19, %cst_11 [1] : vector<16x32xf32> to vector<16xf32>
    %21 = vector.shape_cast %20 : vector<16xf32> to vector<16x1xf32>
    %22 = vector.broadcast %21 : vector<16x1xf32> to vector<16x32xf32>
    %23 = arith.subf %19, %22 : vector<16x32xf32>
    %24 = math.exp %23 : vector<16x32xf32>
    %cst_12 = arith.constant dense<0.000000e+00> : vector<16xf32>
    %25 = vector.multi_reduction <add>, %24, %cst_12 [1] : vector<16x32xf32> to vector<16xf32>
    %26 = vector.shape_cast %25 : vector<16xf32> to vector<16x1xf32>
    %27 = tpu.reciprocal %26 {approx = true} : vector<16x1xf32> -> vector<16x1xf32>
    %28 = arith.truncf %24 : vector<16x32xf32> to vector<16x32xbf16>
    %cst_13 = arith.constant dense<0.000000e+00> : vector<16x8xf32>
    %29 = tpu.matmul %28, %18, %cst_13 {dimension_numbers = #tpu.dot_dimension_numbers<[1], [0], [0], [1], [0, 0, 1, 1], [], []>} : vector<16x32xbf16>, vector<32x8xbf16>, vector<16x8xf32> -> vector<16x8xf32>
    %30 = vector.broadcast %27 : vector<16x1xf32> to vector<16x8xf32>
    %31 = arith.mulf %29, %30 : vector<16x8xf32>
    %32 = vector.extract_strided_slice %15 {offsets = [0, 8], sizes = [16, 8], strides = [1, 1]} : vector<16x32xbf16> to vector<16x8xbf16>
    %c0_14 = arith.constant 0 : index
    %c8 = arith.constant 8 : index
    %33 = vector.load %arg18[%c0_14, %c8] : memref<32x64xbf16, #tpu.memory_space<vmem>>, vector<32x8xbf16>
    %c0_15 = arith.constant 0 : index
    %c40 = arith.constant 40 : index
    %34 = vector.load %arg18[%c0_15, %c40] : memref<32x64xbf16, #tpu.memory_space<vmem>>, vector<32x8xbf16>
    %cst_16 = arith.constant dense<0.000000e+00> : vector<16x32xf32>
    %35 = tpu.matmul %32, %33, %cst_16 {dimension_numbers = #tpu.dot_dimension_numbers<[1], [1], [0], [0], [0, 0, 1, 0], [], []>} : vector<16x8xbf16>, vector<32x8xbf16>, vector<16x32xf32> -> vector<16x32xf32>
    %cst_17 = arith.constant dense<0xFF800000> : vector<16xf32>
    %36 = vector.multi_reduction <maximumf>, %35, %cst_17 [1] : vector<16x32xf32> to vector<16xf32>
    %37 = vector.shape_cast %36 : vector<16xf32> to vector<16x1xf32>
    %38 = vector.broadcast %37 : vector<16x1xf32> to vector<16x32xf32>
    %39 = arith.subf %35, %38 : vector<16x32xf32>
    %40 = math.exp %39 : vector<16x32xf32>
    %cst_18 = arith.constant dense<0.000000e+00> : vector<16xf32>
    %41 = vector.multi_reduction <add>, %40, %cst_18 [1] : vector<16x32xf32> to vector<16xf32>
    %42 = vector.shape_cast %41 : vector<16xf32> to vector<16x1xf32>
    %43 = tpu.reciprocal %42 {approx = true} : vector<16x1xf32> -> vector<16x1xf32>
    %44 = arith.truncf %40 : vector<16x32xf32> to vector<16x32xbf16>
    %cst_19 = arith.constant dense<0.000000e+00> : vector<16x8xf32>
    %45 = tpu.matmul %44, %34, %cst_19 {dimension_numbers = #tpu.dot_dimension_numbers<[1], [0], [0], [1], [0, 0, 1, 1], [], []>} : vector<16x32xbf16>, vector<32x8xbf16>, vector<16x8xf32> -> vector<16x8xf32>
    %46 = vector.broadcast %43 : vector<16x1xf32> to vector<16x8xf32>
    %47 = arith.mulf %45, %46 : vector<16x8xf32>
    %48 = vector.extract_strided_slice %15 {offsets = [0, 16], sizes = [16, 8], strides = [1, 1]} : vector<16x32xbf16> to vector<16x8xbf16>
    %c0_20 = arith.constant 0 : index
    %c16 = arith.constant 16 : index
    %49 = vector.load %arg18[%c0_20, %c16] : memref<32x64xbf16, #tpu.memory_space<vmem>>, vector<32x8xbf16>
    %c0_21 = arith.constant 0 : index
    %c48 = arith.constant 48 : index
    %50 = vector.load %arg18[%c0_21, %c48] : memref<32x64xbf16, #tpu.memory_space<vmem>>, vector<32x8xbf16>
    %cst_22 = arith.constant dense<0.000000e+00> : vector<16x32xf32>
    %51 = tpu.matmul %48, %49, %cst_22 {dimension_numbers = #tpu.dot_dimension_numbers<[1], [1], [0], [0], [0, 0, 1, 0], [], []>} : vector<16x8xbf16>, vector<32x8xbf16>, vector<16x32xf32> -> vector<16x32xf32>
    %cst_23 = arith.constant dense<0xFF800000> : vector<16xf32>
    %52 = vector.multi_reduction <maximumf>, %51, %cst_23 [1] : vector<16x32xf32> to vector<16xf32>
    %53 = vector.shape_cast %52 : vector<16xf32> to vector<16x1xf32>
    %54 = vector.broadcast %53 : vector<16x1xf32> to vector<16x32xf32>
    %55 = arith.subf %51, %54 : vector<16x32xf32>
    %56 = math.exp %55 : vector<16x32xf32>
    %cst_24 = arith.constant dense<0.000000e+00> : vector<16xf32>
    %57 = vector.multi_reduction <add>, %56, %cst_24 [1] : vector<16x32xf32> to vector<16xf32>
    %58 = vector.shape_cast %57 : vector<16xf32> to vector<16x1xf32>
    %59 = tpu.reciprocal %58 {approx = true} : vector<16x1xf32> -> vector<16x1xf32>
    %60 = arith.truncf %56 : vector<16x32xf32> to vector<16x32xbf16>
    %cst_25 = arith.constant dense<0.000000e+00> : vector<16x8xf32>
    %61 = tpu.matmul %60, %50, %cst_25 {dimension_numbers = #tpu.dot_dimension_numbers<[1], [0], [0], [1], [0, 0, 1, 1], [], []>} : vector<16x32xbf16>, vector<32x8xbf16>, vector<16x8xf32> -> vector<16x8xf32>
    %62 = vector.broadcast %59 : vector<16x1xf32> to vector<16x8xf32>
    %63 = arith.mulf %61, %62 : vector<16x8xf32>
    %64 = vector.extract_strided_slice %15 {offsets = [0, 24], sizes = [16, 8], strides = [1, 1]} : vector<16x32xbf16> to vector<16x8xbf16>
    %c0_26 = arith.constant 0 : index
    %c24 = arith.constant 24 : index
    %65 = vector.load %arg18[%c0_26, %c24] : memref<32x64xbf16, #tpu.memory_space<vmem>>, vector<32x8xbf16>
    %c0_27 = arith.constant 0 : index
    %c56 = arith.constant 56 : index
    %66 = vector.load %arg18[%c0_27, %c56] : memref<32x64xbf16, #tpu.memory_space<vmem>>, vector<32x8xbf16>
    %cst_28 = arith.constant dense<0.000000e+00> : vector<16x32xf32>
    %67 = tpu.matmul %64, %65, %cst_28 {dimension_numbers = #tpu.dot_dimension_numbers<[1], [1], [0], [0], [0, 0, 1, 0], [], []>} : vector<16x8xbf16>, vector<32x8xbf16>, vector<16x32xf32> -> vector<16x32xf32>
    %cst_29 = arith.constant dense<0xFF800000> : vector<16xf32>
    %68 = vector.multi_reduction <maximumf>, %67, %cst_29 [1] : vector<16x32xf32> to vector<16xf32>
    %69 = vector.shape_cast %68 : vector<16xf32> to vector<16x1xf32>
    %70 = vector.broadcast %69 : vector<16x1xf32> to vector<16x32xf32>
    %71 = arith.subf %67, %70 : vector<16x32xf32>
    %72 = math.exp %71 : vector<16x32xf32>
    %cst_30 = arith.constant dense<0.000000e+00> : vector<16xf32>
    %73 = vector.multi_reduction <add>, %72, %cst_30 [1] : vector<16x32xf32> to vector<16xf32>
    %74 = vector.shape_cast %73 : vector<16xf32> to vector<16x1xf32>
    %75 = tpu.reciprocal %74 {approx = true} : vector<16x1xf32> -> vector<16x1xf32>
    %76 = arith.truncf %72 : vector<16x32xf32> to vector<16x32xbf16>
    %cst_31 = arith.constant dense<0.000000e+00> : vector<16x8xf32>
    %77 = tpu.matmul %76, %66, %cst_31 {dimension_numbers = #tpu.dot_dimension_numbers<[1], [0], [0], [1], [0, 0, 1, 1], [], []>} : vector<16x32xbf16>, vector<32x8xbf16>, vector<16x8xf32> -> vector<16x8xf32>
    %78 = vector.broadcast %75 : vector<16x1xf32> to vector<16x8xf32>
    %79 = arith.mulf %77, %78 : vector<16x8xf32>
    %80 = tpu.concatenate %31, %47, %63, %79 in 1 : vector<16x8xf32>, vector<16x8xf32>, vector<16x8xf32>, vector<16x8xf32> -> vector<16x32xf32>
    %81 = arith.truncf %80 : vector<16x32xf32> to vector<16x32xbf16>
    %c0_32 = arith.constant 0 : index
    %c0_33 = arith.constant 0 : index
    %82 = vector.load %arg9[%c0_32, %c0_33] : memref<32x32xbf16, #tpu.memory_space<vmem>>, vector<32x32xbf16>
    %cst_34 = arith.constant dense<0.000000e+00> : vector<16x32xf32>
    %83 = tpu.matmul %81, %82, %cst_34 {dimension_numbers = #tpu.dot_dimension_numbers<[1], [0], [0], [1], [0, 0, 1, 1], [], []>} : vector<16x32xbf16>, vector<32x32xbf16>, vector<16x32xf32> -> vector<16x32xf32>
    %c0_35 = arith.constant 0 : index
    %c0_36 = arith.constant 0 : index
    %84 = vector.load %arg10[%c0_35, %c0_36] : memref<1x32xf32, #tpu.memory_space<vmem>>, vector<1x32xf32>
    %85 = vector.broadcast %84 : vector<1x32xf32> to vector<16x32xf32>
    %86 = arith.addf %83, %85 : vector<16x32xf32>
    %87 = arith.addf %7, %86 : vector<16x32xf32>
    %c0_37 = arith.constant 0 : index
    %c0_38 = arith.constant 0 : index
    %88 = vector.load %arg11[%c0_37, %c0_38] : memref<1x32xf32, #tpu.memory_space<vmem>>, vector<1x32xf32>
    %c0_39 = arith.constant 0 : index
    %c0_40 = arith.constant 0 : index
    %89 = vector.load %arg12[%c0_39, %c0_40] : memref<1x32xf32, #tpu.memory_space<vmem>>, vector<1x32xf32>
    %cst_41 = arith.constant dense<0.000000e+00> : vector<16xf32>
    %90 = vector.multi_reduction <add>, %87, %cst_41 [1] : vector<16x32xf32> to vector<16xf32>
    %91 = vector.shape_cast %90 : vector<16xf32> to vector<16x1xf32>
    %cst_42 = arith.constant 3.200000e+01 : f32
    %92 = vector.broadcast %cst_42 : f32 to vector<16x1xf32>
    %93 = arith.divf %91, %92 : vector<16x1xf32>
    %94 = vector.broadcast %93 : vector<16x1xf32> to vector<16x32xf32>
    %95 = arith.subf %87, %94 : vector<16x32xf32>
    %96 = arith.mulf %95, %95 : vector<16x32xf32>
    %cst_43 = arith.constant dense<0.000000e+00> : vector<16xf32>
    %97 = vector.multi_reduction <add>, %96, %cst_43 [1] : vector<16x32xf32> to vector<16xf32>
    %98 = vector.shape_cast %97 : vector<16xf32> to vector<16x1xf32>
    %cst_44 = arith.constant 3.200000e+01 : f32
    %99 = vector.broadcast %cst_44 : f32 to vector<16x1xf32>
    %100 = arith.divf %98, %99 : vector<16x1xf32>
    %101 = vector.broadcast %93 : vector<16x1xf32> to vector<16x32xf32>
    %102 = arith.subf %87, %101 : vector<16x32xf32>
    %cst_45 = arith.constant 9.99999997E-7 : f32
    %103 = vector.broadcast %cst_45 : f32 to vector<16x1xf32>
    %104 = arith.addf %100, %103 : vector<16x1xf32>
    %105 = math.rsqrt %104 : vector<16x1xf32>
    %106 = vector.broadcast %105 : vector<16x1xf32> to vector<16x32xf32>
    %107 = arith.mulf %102, %106 : vector<16x32xf32>
    %108 = vector.broadcast %88 : vector<1x32xf32> to vector<16x32xf32>
    %109 = arith.mulf %107, %108 : vector<16x32xf32>
    %110 = vector.broadcast %89 : vector<1x32xf32> to vector<16x32xf32>
    %111 = arith.addf %109, %110 : vector<16x32xf32>
    %112 = arith.truncf %111 : vector<16x32xf32> to vector<16x32xbf16>
    %c0_46 = arith.constant 0 : index
    %c0_47 = arith.constant 0 : index
    %113 = vector.load %arg13[%c0_46, %c0_47] : memref<32x128xbf16, #tpu.memory_space<vmem>>, vector<32x128xbf16>
    %cst_48 = arith.constant dense<0.000000e+00> : vector<16x128xf32>
    %114 = tpu.matmul %112, %113, %cst_48 {dimension_numbers = #tpu.dot_dimension_numbers<[1], [0], [0], [1], [0, 0, 1, 1], [], []>} : vector<16x32xbf16>, vector<32x128xbf16>, vector<16x128xf32> -> vector<16x128xf32>
    %c0_49 = arith.constant 0 : index
    %c0_50 = arith.constant 0 : index
    %115 = vector.load %arg14[%c0_49, %c0_50] : memref<1x128xf32, #tpu.memory_space<vmem>>, vector<1x128xf32>
    %116 = vector.broadcast %115 : vector<1x128xf32> to vector<16x128xf32>
    %117 = arith.addf %114, %116 : vector<16x128xf32>
    %118 = arith.mulf %117, %117 : vector<16x128xf32>
    %119 = arith.mulf %117, %118 : vector<16x128xf32>
    %cst_51 = arith.constant 4.471500e-02 : f32
    %120 = vector.broadcast %cst_51 : f32 to vector<16x128xf32>
    %121 = arith.mulf %120, %119 : vector<16x128xf32>
    %122 = arith.addf %117, %121 : vector<16x128xf32>
    %cst_52 = arith.constant 0.797884583 : f32
    %123 = vector.broadcast %cst_52 : f32 to vector<16x128xf32>
    %124 = arith.mulf %123, %122 : vector<16x128xf32>
    %125 = math.tanh %124 : vector<16x128xf32>
    %cst_53 = arith.constant 1.000000e+00 : f32
    %126 = vector.broadcast %cst_53 : f32 to vector<16x128xf32>
    %127 = arith.addf %126, %125 : vector<16x128xf32>
    %cst_54 = arith.constant 5.000000e-01 : f32
    %128 = vector.broadcast %cst_54 : f32 to vector<16x128xf32>
    %129 = arith.mulf %128, %127 : vector<16x128xf32>
    %130 = arith.mulf %117, %129 : vector<16x128xf32>
    %131 = arith.truncf %130 : vector<16x128xf32> to vector<16x128xbf16>
    %c0_55 = arith.constant 0 : index
    %c0_56 = arith.constant 0 : index
    %132 = vector.load %arg15[%c0_55, %c0_56] : memref<128x32xbf16, #tpu.memory_space<vmem>>, vector<128x32xbf16>
    %cst_57 = arith.constant dense<0.000000e+00> : vector<16x32xf32>
    %133 = tpu.matmul %131, %132, %cst_57 {dimension_numbers = #tpu.dot_dimension_numbers<[1], [0], [0], [1], [0, 0, 1, 1], [], []>} : vector<16x128xbf16>, vector<128x32xbf16>, vector<16x32xf32> -> vector<16x32xf32>
    %c0_58 = arith.constant 0 : index
    %c0_59 = arith.constant 0 : index
    %134 = vector.load %arg16[%c0_58, %c0_59] : memref<1x32xf32, #tpu.memory_space<vmem>>, vector<1x32xf32>
    %135 = vector.broadcast %134 : vector<1x32xf32> to vector<16x32xf32>
    %136 = arith.addf %133, %135 : vector<16x32xf32>
    %137 = arith.addf %87, %136 : vector<16x32xf32>
    %c0_60 = arith.constant 0 : index
    %c0_61 = arith.constant 0 : index
    %c0_62 = arith.constant 0 : index
    %138 = vector.load %arg17[%c0_60, %c0_61, %c0_62] : memref<1x16x32xf32, #tpu.memory_space<vmem>>, vector<1x16x32xf32>
    %139 = vector.shape_cast %138 : vector<1x16x32xf32> to vector<16x32xf32>
    %140 = vector.shape_cast %137 : vector<16x32xf32> to vector<1x16x32xf32>
    tpu.vector_store %arg17[%c0_60, %c0_61, %c0_62], %140 {strides = array<i32>} : memref<1x16x32xf32, #tpu.memory_space<vmem>>, vector<1x16x32xf32>,
    return
  }
  func.func @transform_0(%arg0: i32, %arg1: i32) -> (i32, i32, i32) {
    %c0_i32 = arith.constant 0 : i32
    %c0_i32_0 = arith.constant 0 : i32
    %c0_i32_1 = arith.constant 0 : i32
    return %arg0, %c0_i32, %c0_i32_0 : i32, i32, i32
  }
  func.func @transform_1(%arg0: i32, %arg1: i32) -> (i32, i32) {
    %c0_i32 = arith.constant 0 : i32
    %c0_i32_0 = arith.constant 0 : i32
    %c0_i32_1 = arith.constant 0 : i32
    return %c0_i32, %c0_i32_0 : i32, i32
  }
  func.func @transform_2(%arg0: i32, %arg1: i32) -> (i32, i32) {
    %c0_i32 = arith.constant 0 : i32
    %c0_i32_0 = arith.constant 0 : i32
    %c0_i32_1 = arith.constant 0 : i32
    return %c0_i32, %c0_i32_0 : i32, i32
  }
  func.func @transform_3(%arg0: i32, %arg1: i32) -> (i32, i32) {
    %c0_i32 = arith.constant 0 : i32
    %c0_i32_0 = arith.constant 0 : i32
    %c0_i32_1 = arith.constant 0 : i32
    return %c0_i32, %c0_i32_0 : i32, i32
  }
  func.func @transform_4(%arg0: i32, %arg1: i32) -> (i32, i32) {
    %c0_i32 = arith.constant 0 : i32
    %c0_i32_0 = arith.constant 0 : i32
    %c0_i32_1 = arith.constant 0 : i32
    return %c0_i32, %c0_i32_0 : i32, i32
  }
  func.func @transform_5(%arg0: i32, %arg1: i32) -> (i32, i32) {
    %c0_i32 = arith.constant 0 : i32
    %c0_i32_0 = arith.constant 0 : i32
    %c0_i32_1 = arith.constant 0 : i32
    return %c0_i32, %c0_i32_0 : i32, i32
  }
  func.func @transform_6(%arg0: i32, %arg1: i32) -> (i32, i32) {
    %c0_i32 = arith.constant 0 : i32
    %c0_i32_0 = arith.constant 0 : i32
    %c0_i32_1 = arith.constant 0 : i32
    return %c0_i32, %c0_i32_0 : i32, i32
  }
  func.func @transform_7(%arg0: i32, %arg1: i32) -> (i32, i32) {
    %c0_i32 = arith.constant 0 : i32
    %c0_i32_0 = arith.constant 0 : i32
    %c0_i32_1 = arith.constant 0 : i32
    return %c0_i32, %c0_i32_0 : i32, i32
  }
  func.func @transform_8(%arg0: i32, %arg1: i32) -> (i32, i32) {
    %c0_i32 = arith.constant 0 : i32
    %c0_i32_0 = arith.constant 0 : i32
    %c0_i32_1 = arith.constant 0 : i32
    return %c0_i32, %c0_i32_0 : i32, i32
  }
  func.func @transform_9(%arg0: i32, %arg1: i32) -> (i32, i32) {
    %c0_i32 = arith.constant 0 : i32
    %c0_i32_0 = arith.constant 0 : i32
    %c0_i32_1 = arith.constant 0 : i32
    return %c0_i32, %c0_i32_0 : i32, i32
  }
  func.func @transform_10(%arg0: i32, %arg1: i32) -> (i32, i32) {
    %c0_i32 = arith.constant 0 : i32
    %c0_i32_0 = arith.constant 0 : i32
    %c0_i32_1 = arith.constant 0 : i32
    return %c0_i32, %c0_i32_0 : i32, i32
  }
  func.func @transform_11(%arg0: i32, %arg1: i32) -> (i32, i32) {
    %c0_i32 = arith.constant 0 : i32
    %c0_i32_0 = arith.constant 0 : i32
    %c0_i32_1 = arith.constant 0 : i32
    return %c0_i32, %c0_i32_0 : i32, i32
  }
  func.func @transform_12(%arg0: i32, %arg1: i32) -> (i32, i32) {
    %c0_i32 = arith.constant 0 : i32
    %c0_i32_0 = arith.constant 0 : i32
    %c0_i32_1 = arith.constant 0 : i32
    return %c0_i32, %c0_i32_0 : i32, i32
  }
  func.func @transform_13(%arg0: i32, %arg1: i32) -> (i32, i32) {
    %c0_i32 = arith.constant 0 : i32
    %c0_i32_0 = arith.constant 0 : i32
    %c0_i32_1 = arith.constant 0 : i32
    return %c0_i32, %c0_i32_0 : i32, i32
  }
  func.func @transform_14(%arg0: i32, %arg1: i32) -> (i32, i32) {
    %c0_i32 = arith.constant 0 : i32
    %c0_i32_0 = arith.constant 0 : i32
    %c0_i32_1 = arith.constant 0 : i32
    return %c0_i32, %c0_i32_0 : i32, i32
  }
  func.func @transform_15(%arg0: i32, %arg1: i32) -> (i32, i32, i32) {
    %c0_i32 = arith.constant 0 : i32
    %c0_i32_0 = arith.constant 0 : i32
    return %arg0, %arg1, %c0_i32 : i32, i32, i32
  }
}

</mosaic_0001>

<llo_original>
// kernel: tpu_custom_call.1
$region0: #{tpu_custom_call.1}
  #allocation0 [shape = 'u32[]', space=smem, size = 0x4, offset = 0x4, fixed_abs, tag = 'smem constant byte address 0x4 - core index']
  #allocation1 [shape = 'u32[144,128]{1,0:T(1,128)}', space=vmem, size = 0x12000, scoped, tag = 'internal scratch']
  #allocation2 [shape = 'bf16[32,64]{1,0:T(16,128)(2,1)}', space=vmem, size = 0x2000, scoped, tag = 'scratch operand']
  #allocation3 [shape = 'bf16[32,32]{1,0:T(16,128)(2,1)}', space=vmem, size = 0x2000, scoped, tag = 'scratch operand']
  %s0 = inlined_call_operand.vmem [shape: f32[2,32,32], index: 0, kind: input, shape index: {}]
  %s1 = inlined_call_operand.vmem [shape: f32[1,32], index: 1, kind: input, shape index: {}]
  %s2 = inlined_call_operand.vmem [shape: f32[1,32], index: 2, kind: input, shape index: {}]
  %s3 = inlined_call_operand.vmem [shape: bf16[32,32], index: 3, kind: input, shape index: {}]
  %s4 = inlined_call_operand.hbm [shape: f32[1,32], index: 4, kind: input, shape index: {}]
  %s5 = inlined_call_operand.hbm [shape: bf16[32,64], index: 5, kind: input, shape index: {}]
  %s6 = inlined_call_operand.hbm [shape: f32[1,64], index: 6, kind: input, shape index: {}]
  %s7 = inlined_call_operand.hbm [shape: bf16[32,32], index: 7, kind: input, shape index: {}]
  %s8 = inlined_call_operand.hbm [shape: f32[1,32], index: 8, kind: input, shape index: {}]
  %s9 = inlined_call_operand.hbm [shape: f32[1,32], index: 9, kind: input, shape index: {}]
  %s10 = inlined_call_operand.vmem [shape: f32[1,32], index: 10, kind: input, shape index: {}]
  %s11 = inlined_call_operand.vmem [shape: bf16[32,128], index: 11, kind: input, shape index: {}]
  %s12 = inlined_call_operand.vmem [shape: f32[1,128], index: 12, kind: input, shape index: {}]
  %s13 = inlined_call_operand.vmem [shape: bf16[128,32], index: 13, kind: input, shape index: {}]
  %s14 = inlined_call_operand.vmem [shape: f32[1,32], index: 14, kind: input, shape index: {}]
  %s15 = inlined_call_operand.hbm [shape: f32[2,32,32], index: 15, kind: output, shape index: {}]
  %s16 = sld [smem:[#allocation0]]
  $region121: #{tpu_custom_call.1} parent=0
    _
  %s18 = ssub.s32 1, %s16
  %s19 = scalar_select 0, %s18, %s16
  $region1: #{tpu_custom_call.1} parent=0
    #allocation4 [shape = 'u8[512]{0}', space=vmem, size = 0x400, scoped, tag = 'input window, operand 4, single buffered']
    #allocation5 [shape = 's32[2]{0}', space=sflag, size = 0x8, scoped, tag = 'scoped memory for tpu_custom_call.1']
    #allocation6 [shape = 's32[2]{0}', space=sflag, size = 0x8, scoped, tag = 'scoped memory for tpu_custom_call.1']
    #allocation7 [shape = 'u8[8192]{0}', space=vmem, size = 0x2000, scoped, tag = 'input window, operand 5, single buffered']
    #allocation8 [shape = 's32[1]{0}', space=sflag, size = 0x4, scoped, tag = 'scoped memory for tpu_custom_call.1']
    #allocation9 [shape = 'u8[512]{0}', space=vmem, size = 0x400, scoped, tag = 'input window, operand 6, single buffered']
    #allocation10 [shape = 'u8[8192]{0}', space=vmem, size = 0x2000, scoped, tag = 'input window, operand 7, single buffered']
    #allocation11 [shape = 's32[1]{0}', space=sflag, size = 0x4, scoped, tag = 'scoped memory for tpu_custom_call.1']
    #allocation12 [shape = 'u8[512]{0}', space=vmem, size = 0x400, scoped, tag = 'input window, operand 8, single buffered']
    #allocation13 [shape = 'u8[512]{0}', space=vmem, size = 0x400, scoped, tag = 'input window, operand 9, single buffered']
    #allocation14 [shape = 's32[1]{0}', space=sflag, size = 0x4, scoped, tag = 'scoped memory for tpu_custom_call.1']
    #allocation15 [shape = 'u8[16384]{0}', space=vmem, size = 0x4000, scoped, tag = 'output window, operand 0']
    %20 = vsyncpa [#allocation5], 0
    %21 = vsyncpa [#allocation8], 0
    %22 = vsyncpa [#allocation11], 0
    %23 = vsyncpa [#allocation14], 0
    %24 = vsyncpa [#allocation6], 0
    %s25 = scalar_lea.sflag [#allocation6], 1
    %26 = vsyncpa %s25, 0
    loop: start=0, step=1, limit=6
    $region2: #{tpu_custom_call.1} parent=1 // loop_pre_header
      _
    $region3: #{tpu_custom_call.1} parent=1 // loop_header
      %s28 = sphi 0, %s32
      %p29 = scmp.ge.s32.totalorder %s28, 6
      %s35 = sphi 0, %s47
      %s36 = sphi 0, %s43
      %s37 = sphi 0, %s35
      %s38 = sphi 0, %s36
      %s39 = sphi 0, %s37
      %s40 = sphi 0, %s38
      %s50 = sphi 0, %s52
      %s53 = sphi 0, %s50
      %s54 = sphi 0, %s53
      %s70 = sphi 0, %s54
      %s74 = sphi 0, %s74
      %s76 = sphi 0, %s74
      %s77 = sphi 0, %s76
      %s91 = sphi 0, %s77
      %s95 = sphi 0, %s95
      %s97 = sphi 0, %s95
      %s98 = sphi 0, %s97
      %s112 = sphi 0, %s98
      %s116 = sphi 0, %s116
      %s118 = sphi 0, %s116
      %s119 = sphi 0, %s118
      %s133 = sphi 0, %s119
      %s137 = sphi 0, %s137
      %s139 = sphi 0, %s137
      %s140 = sphi 0, %s139
      %s154 = sphi 0, %s140
      %s158 = sphi 0, %s158
      %s160 = sphi 0, %s158
      %s161 = sphi 0, %s160
      %s175 = sphi 0, %s161
      %s179 = sphi 0, %s179
      %s181 = sphi 0, %s179
      %s182 = sphi 0, %s181
      %s196 = sphi 0, %s182
      %s200 = sphi 0, %s200
      %s202 = sphi 0, %s200
      %s203 = sphi 0, %s202
      %s217 = sphi 0, %s203
      %s221 = sphi 0, %s221
      %s223 = sphi 0, %s221
      %s224 = sphi 0, %s223
      %s238 = sphi 0, %s224
      %s242 = sphi 0, %s242
      %s244 = sphi 0, %s242
      %s245 = sphi 0, %s244
      %s259 = sphi 0, %s245
      %s263 = sphi 0, %s263
      %s265 = sphi 0, %s263
      %s266 = sphi 0, %s265
      %s280 = sphi 0, %s266
      %s284 = sphi 0, %s284
      %s286 = sphi 0, %s284
      %s287 = sphi 0, %s286
      %s301 = sphi 0, %s287
      %s305 = sphi 0, %s305
      %s307 = sphi 0, %s305
      %s308 = sphi 0, %s307
      %s322 = sphi 0, %s308
      %s326 = sphi 0, %s326
      %s328 = sphi 0, %s326
      %s329 = sphi 0, %s328
      %s343 = sphi 0, %s329
      %s347 = sphi 0, %s347
      %s349 = sphi 0, %s347
      %s350 = sphi 0, %s349
      %s364 = sphi 0, %s350
      %s372 = sphi 0, %s374
      %s375 = sphi 0, %s372
      %s376 = sphi 0, %s375
      %s392 = sphi 0, %s376
    $region4: #{tpu_custom_call.1} parent=1 // loop_header_branch
      %31 = sbr.rel (%p29) target = $region8
    $region5: #{tpu_custom_call.1} parent=1 // loop_body
      %s33 = ssub.s32 %s28, 1
      %s34 = ssub.s32 %s28, 2
      %s41 = sadd.s32 1, %s36
      %p42 = scmp.ge.s32.totalorder %s41, 2
      %s43 = scalar_select %p42, 0, %s41
      %s44 = sadd.s32 1, %s35
      %s45 = scalar_select %p42, %s44, %s35
      %p46 = scmp.ge.s32.totalorder %s45, 2
      %s47 = scalar_select %p46, 0, %s45
      %s48 = ssub.s32 %s35, %s47
      %p49 = scmp.eq.s32.totalorder %s48, 0
      %s51 = sadd.s32 %s50, 1
      %s52 = scalar_select %p49, %s50, %s51
      %p55 = pneg %p49
      %p56 = scmp.eq.s32.totalorder %s28, 3
      %p57 = por %p55, %p56
      %p58 = scmp.ne.s32.totalorder %s50, %s53
      %p59 = scmp.eq.s32.totalorder %s28, 0
      %p60 = por %p58, %p59
      %p61 = scmp.ne.s32.totalorder %s50, %s53
      %p62 = scmp.eq.s32.totalorder %s33, 3
      %p63 = por %p61, %p62
      %p64 = scmp.ne.s32.totalorder %s53, %s54
      %p65 = scmp.eq.s32.totalorder %s33, 0
      %p66 = por %p64, %p65
      %p67 = scmp.ne.s32.totalorder %s53, %s54
      %p68 = scmp.eq.s32.totalorder %s34, 3
      %p69 = por %p67, %p68
      %p71 = scmp.ne.s32.totalorder %s54, %s70
      %p72 = scmp.eq.s32.totalorder %s34, 0
      %p73 = por %p71, %p72
      %s75 = sadd.s32 %s74, 1
      %p78 = scmp.eq.s32.totalorder %s28, 3
      %p79 = scmp.ne.s32.totalorder %s74, %s76
      %p80 = scmp.eq.s32.totalorder %s28, 0
      %p81 = por %p79, %p80
      %p82 = scmp.ne.s32.totalorder %s74, %s76
      %p83 = scmp.eq.s32.totalorder %s33, 3
      %p84 = por %p82, %p83
      %p85 = scmp.ne.s32.totalorder %s76, %s77
      %p86 = scmp.eq.s32.totalorder %s33, 0
      %p87 = por %p85, %p86
      %p88 = scmp.ne.s32.totalorder %s76, %s77
      %p89 = scmp.eq.s32.totalorder %s34, 3
      %p90 = por %p88, %p89
      %p92 = scmp.ne.s32.totalorder %s77, %s91
      %p93 = scmp.eq.s32.totalorder %s34, 0
      %p94 = por %p92, %p93
      %s96 = sadd.s32 %s95, 1
      %p99 = scmp.eq.s32.totalorder %s28, 3
      %p100 = scmp.ne.s32.totalorder %s95, %s97
      %p101 = scmp.eq.s32.totalorder %s28, 0
      %p102 = por %p100, %p101
      %p103 = scmp.ne.s32.totalorder %s95, %s97
      %p104 = scmp.eq.s32.totalorder %s33, 3
      %p105 = por %p103, %p104
      %p106 = scmp.ne.s32.totalorder %s97, %s98
      %p107 = scmp.eq.s32.totalorder %s33, 0
      %p108 = por %p106, %p107
      %p109 = scmp.ne.s32.totalorder %s97, %s98
      %p110 = scmp.eq.s32.totalorder %s34, 3
      %p111 = por %p109, %p110
      %p113 = scmp.ne.s32.totalorder %s98, %s112
      %p114 = scmp.eq.s32.totalorder %s34, 0
      %p115 = por %p113, %p114
      %s117 = sadd.s32 %s116, 1
      %p120 = scmp.eq.s32.totalorder %s28, 3
      %p121 = scmp.ne.s32.totalorder %s116, %s118
      %p122 = scmp.eq.s32.totalorder %s28, 0
      %p123 = por %p121, %p122
      %p124 = scmp.ne.s32.totalorder %s116, %s118
      %p125 = scmp.eq.s32.totalorder %s33, 3
      %p126 = por %p124, %p125
      %p127 = scmp.ne.s32.totalorder %s118, %s119
      %p128 = scmp.eq.s32.totalorder %s33, 0
      %p129 = por %p127, %p128
      %p130 = scmp.ne.s32.totalorder %s118, %s119
      %p131 = scmp.eq.s32.totalorder %s34, 3
      %p132 = por %p130, %p131
      %p134 = scmp.ne.s32.totalorder %s119, %s133
      %p135 = scmp.eq.s32.totalorder %s34, 0
      %p136 = por %p134, %p135
      %s138 = sadd.s32 %s137, 1
      %p141 = scmp.eq.s32.totalorder %s28, 3
      %p142 = scmp.ne.s32.totalorder %s137, %s139
      %p143 = scmp.eq.s32.totalorder %s28, 0
      %p144 = por %p142, %p143
      %p145 = scmp.ne.s32.totalorder %s137, %s139
      %p146 = scmp.eq.s32.totalorder %s33, 3
      %p147 = por %p145, %p146
      %p148 = scmp.ne.s32.totalorder %s139, %s140
      %p149 = scmp.eq.s32.totalorder %s33, 0
      %p150 = por %p148, %p149
      %p151 = scmp.ne.s32.totalorder %s139, %s140
      %p152 = scmp.eq.s32.totalorder %s34, 3
      %p153 = por %p151, %p152
      %p155 = scmp.ne.s32.totalorder %s140, %s154
      %p156 = scmp.eq.s32.totalorder %s34, 0
      %p157 = por %p155, %p156
      %s159 = sadd.s32 %s158, 1
      %p162 = scmp.eq.s32.totalorder %s28, 3
      %p163 = scmp.ne.s32.totalorder %s158, %s160
      %p164 = scmp.eq.s32.totalorder %s28, 0
      %p165 = por %p163, %p164
      %p166 = scmp.ne.s32.totalorder %s158, %s160
      %p167 = scmp.eq.s32.totalorder %s33, 3
      %p168 = por %p166, %p167
      %p169 = scmp.ne.s32.totalorder %s160, %s161
      %p170 = scmp.eq.s32.totalorder %s33, 0
      %p171 = por %p169, %p170
      %p172 = scmp.ne.s32.totalorder %s160, %s161
      %p173 = scmp.eq.s32.totalorder %s34, 3
      %p174 = por %p172, %p173
      %p176 = scmp.ne.s32.totalorder %s161, %s175
      %p177 = scmp.eq.s32.totalorder %s34, 0
      %p178 = por %p176, %p177
      %s180 = sadd.s32 %s179, 1
      %p183 = scmp.eq.s32.totalorder %s28, 3
      %p184 = scmp.ne.s32.totalorder %s179, %s181
      %p185 = scmp.eq.s32.totalorder %s28, 0
      %p186 = por %p184, %p185
      %p187 = scmp.ne.s32.totalorder %s179, %s181
      %p188 = scmp.eq.s32.totalorder %s33, 3
      %p189 = por %p187, %p188
      %p190 = scmp.ne.s32.totalorder %s181, %s182
      %p191 = scmp.eq.s32.totalorder %s33, 0
      %p192 = por %p190, %p191
      %p193 = scmp.ne.s32.totalorder %s181, %s182
      %p194 = scmp.eq.s32.totalorder %s34, 3
      %p195 = por %p193, %p194
      %p197 = scmp.ne.s32.totalorder %s182, %s196
      %p198 = scmp.eq.s32.totalorder %s34, 0
      %p199 = por %p197, %p198
      %s201 = sadd.s32 %s200, 1
      %p204 = scmp.eq.s32.totalorder %s28, 3
      %p205 = scmp.ne.s32.totalorder %s200, %s202
      %p206 = scmp.eq.s32.totalorder %s28, 0
      %p207 = por %p205, %p206
      %p208 = scmp.ne.s32.totalorder %s200, %s202
      %p209 = scmp.eq.s32.totalorder %s33, 3
      %p210 = por %p208, %p209
      %p211 = scmp.ne.s32.totalorder %s202, %s203
      %p212 = scmp.eq.s32.totalorder %s33, 0
      %p213 = por %p211, %p212
      %p214 = scmp.ne.s32.totalorder %s202, %s203
      %p215 = scmp.eq.s32.totalorder %s34, 3
      %p216 = por %p214, %p215
      %p218 = scmp.ne.s32.totalorder %s203, %s217
      %p219 = scmp.eq.s32.totalorder %s34, 0
      %p220 = por %p218, %p219
      %s222 = sadd.s32 %s221, 1
      %p225 = scmp.eq.s32.totalorder %s28, 3
      %p226 = scmp.ne.s32.totalorder %s221, %s223
      %p227 = scmp.eq.s32.totalorder %s28, 0
      %p228 = por %p226, %p227
      %p229 = scmp.ne.s32.totalorder %s221, %s223
      %p230 = scmp.eq.s32.totalorder %s33, 3
      %p231 = por %p229, %p230
      %p232 = scmp.ne.s32.totalorder %s223, %s224
      %p233 = scmp.eq.s32.totalorder %s33, 0
      %p234 = por %p232, %p233
      %p235 = scmp.ne.s32.totalorder %s223, %s224
      %p236 = scmp.eq.s32.totalorder %s34, 3
      %p237 = por %p235, %p236
      %p239 = scmp.ne.s32.totalorder %s224, %s238
      %p240 = scmp.eq.s32.totalorder %s34, 0
      %p241 = por %p239, %p240
      %s243 = sadd.s32 %s242, 1
      %p246 = scmp.eq.s32.totalorder %s28, 3
      %p247 = scmp.ne.s32.totalorder %s242, %s244
      %p248 = scmp.eq.s32.totalorder %s28, 0
      %p249 = por %p247, %p248
      %p250 = scmp.ne.s32.totalorder %s242, %s244
      %p251 = scmp.eq.s32.totalorder %s33, 3
      %p252 = por %p250, %p251
      %p253 = scmp.ne.s32.totalorder %s244, %s245
      %p254 = scmp.eq.s32.totalorder %s33, 0
      %p255 = por %p253, %p254
      %p256 = scmp.ne.s32.totalorder %s244, %s245
      %p257 = scmp.eq.s32.totalorder %s34, 3
      %p258 = por %p256, %p257
      %p260 = scmp.ne.s32.totalorder %s245, %s259
      %p261 = scmp.eq.s32.totalorder %s34, 0
      %p262 = por %p260, %p261
      %s264 = sadd.s32 %s263, 1
      %p267 = scmp.eq.s32.totalorder %s28, 3
      %p268 = scmp.ne.s32.totalorder %s263, %s265
      %p269 = scmp.eq.s32.totalorder %s28, 0
      %p270 = por %p268, %p269
      %p271 = scmp.ne.s32.totalorder %s263, %s265
      %p272 = scmp.eq.s32.totalorder %s33, 3
      %p273 = por %p271, %p272
      %p274 = scmp.ne.s32.totalorder %s265, %s266
      %p275 = scmp.eq.s32.totalorder %s33, 0
      %p276 = por %p274, %p275
      %p277 = scmp.ne.s32.totalorder %s265, %s266
      %p278 = scmp.eq.s32.totalorder %s34, 3
      %p279 = por %p277, %p278
      %p281 = scmp.ne.s32.totalorder %s266, %s280
      %p282 = scmp.eq.s32.totalorder %s34, 0
      %p283 = por %p281, %p282
      %s285 = sadd.s32 %s284, 1
      %p288 = scmp.eq.s32.totalorder %s28, 3
      %p289 = scmp.ne.s32.totalorder %s284, %s286
      %p290 = scmp.eq.s32.totalorder %s28, 0
      %p291 = por %p289, %p290
      %p292 = scmp.ne.s32.totalorder %s284, %s286
      %p293 = scmp.eq.s32.totalorder %s33, 3
      %p294 = por %p292, %p293
      %p295 = scmp.ne.s32.totalorder %s286, %s287
      %p296 = scmp.eq.s32.totalorder %s33, 0
      %p297 = por %p295, %p296
      %p298 = scmp.ne.s32.totalorder %s286, %s287
      %p299 = scmp.eq.s32.totalorder %s34, 3
      %p300 = por %p298, %p299
      %p302 = scmp.ne.s32.totalorder %s287, %s301
      %p303 = scmp.eq.s32.totalorder %s34, 0
      %p304 = por %p302, %p303
      %s306 = sadd.s32 %s305, 1
      %p309 = scmp.eq.s32.totalorder %s28, 3
      %p310 = scmp.ne.s32.totalorder %s305, %s307
      %p311 = scmp.eq.s32.totalorder %s28, 0
      %p312 = por %p310, %p311
      %p313 = scmp.ne.s32.totalorder %s305, %s307
      %p314 = scmp.eq.s32.totalorder %s33, 3
      %p315 = por %p313, %p314
      %p316 = scmp.ne.s32.totalorder %s307, %s308
      %p317 = scmp.eq.s32.totalorder %s33, 0
      %p318 = por %p316, %p317
      %p319 = scmp.ne.s32.totalorder %s307, %s308
      %p320 = scmp.eq.s32.totalorder %s34, 3
      %p321 = por %p319, %p320
      %p323 = scmp.ne.s32.totalorder %s308, %s322
      %p324 = scmp.eq.s32.totalorder %s34, 0
      %p325 = por %p323, %p324
      %s327 = sadd.s32 %s326, 1
      %p330 = scmp.eq.s32.totalorder %s28, 3
      %p331 = scmp.ne.s32.totalorder %s326, %s328
      %p332 = scmp.eq.s32.totalorder %s28, 0
      %p333 = por %p331, %p332
      %p334 = scmp.ne.s32.totalorder %s326, %s328
      %p335 = scmp.eq.s32.totalorder %s33, 3
      %p336 = por %p334, %p335
      %p337 = scmp.ne.s32.totalorder %s328, %s329
      %p338 = scmp.eq.s32.totalorder %s33, 0
      %p339 = por %p337, %p338
      %p340 = scmp.ne.s32.totalorder %s328, %s329
      %p341 = scmp.eq.s32.totalorder %s34, 3
      %p342 = por %p340, %p341
      %p344 = scmp.ne.s32.totalorder %s329, %s343
      %p345 = scmp.eq.s32.totalorder %s34, 0
      %p346 = por %p344, %p345
      %s348 = sadd.s32 %s347, 1
      %p351 = scmp.eq.s32.totalorder %s28, 3
      %p352 = scmp.ne.s32.totalorder %s347, %s349
      %p353 = scmp.eq.s32.totalorder %s28, 0
      %p354 = por %p352, %p353
      %p355 = scmp.ne.s32.totalorder %s347, %s349
      %p356 = scmp.eq.s32.totalorder %s33, 3
      %p357 = por %p355, %p356
      %p358 = scmp.ne.s32.totalorder %s349, %s350
      %p359 = scmp.eq.s32.totalorder %s33, 0
      %p360 = por %p358, %p359
      %p361 = scmp.ne.s32.totalorder %s349, %s350
      %p362 = scmp.eq.s32.totalorder %s34, 3
      %p363 = por %p361, %p362
      %p365 = scmp.ne.s32.totalorder %s350, %s364
      %p366 = scmp.eq.s32.totalorder %s34, 0
      %p367 = por %p365, %p366
      %s368 = ssub.s32 %s35, %s47
      %s369 = ssub.s32 %s36, %s43
      %s370 = sor.u32 %s368, %s369
      %p371 = scmp.eq.s32.totalorder %s370, 0
      %s373 = sadd.s32 %s372, 1
      %s374 = scalar_select %p371, %s372, %s373
      %p377 = pneg %p371
      %p378 = scmp.eq.s32.totalorder %s28, 3
      %p379 = por %p377, %p378
      %p380 = scmp.ne.s32.totalorder %s372, %s375
      %p381 = scmp.eq.s32.totalorder %s28, 0
      %p382 = por %p380, %p381
      %p383 = scmp.ne.s32.totalorder %s372, %s375
      %p384 = scmp.eq.s32.totalorder %s33, 3
      %p385 = por %p383, %p384
      %p386 = scmp.ne.s32.totalorder %s375, %s376
      %p387 = scmp.eq.s32.totalorder %s33, 0
      %p388 = por %p386, %p387
      %p389 = scmp.ne.s32.totalorder %s375, %s376
      %p390 = scmp.eq.s32.totalorder %s34, 3
      %p391 = por %p389, %p390
      %p393 = scmp.ne.s32.totalorder %s376, %s392
      %p394 = scmp.eq.s32.totalorder %s34, 0
      %p395 = por %p393, %p394
      %p396 = scmp.le.s32.totalorder 1, %s28
      %p397 = scmp.lt.s32.totalorder %s28, 5
      %p398 = pnand %p396, %p397
      %p399 = pneg %p398
      // Predicated region
      $region9: #{tpu_custom_call.1} parent=5 // pred_check
        _
      $region10: #{tpu_custom_call.1} parent=5 // pred_check_branch
        %401 = sbr.rel (%p398) target = $region12
      $region11: #{tpu_custom_call.1} parent=5 // pred_region
        %s402 = ssub.s32 %s28, 1
        // Predicated region
        $region13: #{tpu_custom_call.1} parent=11 // pred_check
          %p403 = pneg %p66
        $region14: #{tpu_custom_call.1} parent=11 // pred_check_branch
          %405 = sbr.rel (%p403) target = $region16
        $region15: #{tpu_custom_call.1} parent=11 // pred_region
          %p406 = scmp.lt.s32.totalorder %s37, 1
          %s407 = scalar_select %p406, %s37, 1
          %s408 = smul.addr %s407, 4
          %s409 = smul.addr %s408, 8
          %s410 = scalar_lea.vmem %s0, %s409
        $region16: #{tpu_custom_call.1} parent=11 // pred_fallthru
          _
        // Predicated region
        $region17: #{tpu_custom_call.1} parent=11 // pred_check
          %p411 = pneg %p87
        $region18: #{tpu_custom_call.1} parent=11 // pred_check_branch
          %413 = sbr.rel (%p411) target = $region20
        $region19: #{tpu_custom_call.1} parent=11 // pred_region
          _
        $region20: #{tpu_custom_call.1} parent=11 // pred_fallthru
          _
        // Predicated region
        $region21: #{tpu_custom_call.1} parent=11 // pred_check
          %p414 = pneg %p108
        $region22: #{tpu_custom_call.1} parent=11 // pred_check_branch
          %416 = sbr.rel (%p414) target = $region24
        $region23: #{tpu_custom_call.1} parent=11 // pred_region
          _
        $region24: #{tpu_custom_call.1} parent=11 // pred_fallthru
          _
        // Predicated region
        $region25: #{tpu_custom_call.1} parent=11 // pred_check
          %p417 = pneg %p129
        $region26: #{tpu_custom_call.1} parent=11 // pred_check_branch
          %419 = sbr.rel (%p417) target = $region28
        $region27: #{tpu_custom_call.1} parent=11 // pred_region
          _
        $region28: #{tpu_custom_call.1} parent=11 // pred_fallthru
          _
        // Predicated region
        $region29: #{tpu_custom_call.1} parent=11 // pred_check
          %p420 = pneg %p150
        $region30: #{tpu_custom_call.1} parent=11 // pred_check_branch
          %422 = sbr.rel (%p420) target = $region32
        $region31: #{tpu_custom_call.1} parent=11 // pred_region
          %s424 = ssub.s32 16, 16
          %425 = vsyncadd [#allocation5], %s424
          %s427 = sshll.u32 [#allocation4], 4
          %s428 = int_to_ptr.vmem [resolvable:$true] %s427
          %430 = dma.hbm_to_vmem [thread:$0]  %s4, 16, %s428, [#allocation5]
        $region32: #{tpu_custom_call.1} parent=11 // pred_fallthru
          _
        // Predicated region
        $region33: #{tpu_custom_call.1} parent=11 // pred_check
          %p431 = pneg %p171
        $region34: #{tpu_custom_call.1} parent=11 // pred_check_branch
          %433 = sbr.rel (%p431) target = $region36
        $region35: #{tpu_custom_call.1} parent=11 // pred_region
          %s435 = ssub.s32 256, 256
          %436 = vsyncadd [#allocation8], %s435
          %s437 = sshll.u32 [#allocation7], 4
          %s438 = int_to_ptr.vmem [resolvable:$true] %s437
          %443 = dma.hbm_to_vmem [thread:$0]  %s5, 256, %s438, [#allocation8], 64, 64, 4
        $region36: #{tpu_custom_call.1} parent=11 // pred_fallthru
          _
        // Predicated region
        $region37: #{tpu_custom_call.1} parent=11 // pred_check
          %p444 = pneg %p192
        $region38: #{tpu_custom_call.1} parent=11 // pred_check_branch
          %446 = sbr.rel (%p444) target = $region40
        $region39: #{tpu_custom_call.1} parent=11 // pred_region
          %s448 = ssub.s32 16, 16
          %449 = vsyncadd [#allocation8], %s448
          %s451 = sshll.u32 [#allocation9], 4
          %s452 = int_to_ptr.vmem [resolvable:$true] %s451
          %454 = dma.hbm_to_vmem [thread:$0]  %s6, 16, %s452, [#allocation8]
        $region40: #{tpu_custom_call.1} parent=11 // pred_fallthru
          _
        // Predicated region
        $region41: #{tpu_custom_call.1} parent=11 // pred_check
          %p455 = pneg %p213
        $region42: #{tpu_custom_call.1} parent=11 // pred_check_branch
          %457 = sbr.rel (%p455) target = $region44
        $region43: #{tpu_custom_call.1} parent=11 // pred_region
          %s459 = ssub.s32 256, 256
          %460 = vsyncadd [#allocation11], %s459
          %s461 = sshll.u32 [#allocation10], 4
          %s462 = int_to_ptr.vmem [resolvable:$true] %s461
          %467 = dma.hbm_to_vmem [thread:$0]  %s7, 256, %s462, [#allocation11], 64, 64, 4
        $region44: #{tpu_custom_call.1} parent=11 // pred_fallthru
          _
        // Predicated region
        $region45: #{tpu_custom_call.1} parent=11 // pred_check
          %p468 = pneg %p234
        $region46: #{tpu_custom_call.1} parent=11 // pred_check_branch
          %470 = sbr.rel (%p468) target = $region48
        $region47: #{tpu_custom_call.1} parent=11 // pred_region
          %s472 = ssub.s32 16, 16
          %473 = vsyncadd [#allocation11], %s472
          %s475 = sshll.u32 [#allocation12], 4
          %s476 = int_to_ptr.vmem [resolvable:$true] %s475
          %478 = dma.hbm_to_vmem [thread:$0]  %s8, 16, %s476, [#allocation11]
        $region48: #{tpu_custom_call.1} parent=11 // pred_fallthru
          _
        // Predicated region
        $region49: #{tpu_custom_call.1} parent=11 // pred_check
          %p479 = pneg %p255
        $region50: #{tpu_custom_call.1} parent=11 // pred_check_branch
          %481 = sbr.rel (%p479) target = $region52
        $region51: #{tpu_custom_call.1} parent=11 // pred_region
          %s483 = ssub.s32 16, 16
          %484 = vsyncadd [#allocation14], %s483
          %s486 = sshll.u32 [#allocation13], 4
          %s487 = int_to_ptr.vmem [resolvable:$true] %s486
          %489 = dma.hbm_to_vmem [thread:$0]  %s9, 16, %s487, [#allocation14]
        $region52: #{tpu_custom_call.1} parent=11 // pred_fallthru
          _
        // Predicated region
        $region53: #{tpu_custom_call.1} parent=11 // pred_check
          %p490 = pneg %p276
        $region54: #{tpu_custom_call.1} parent=11 // pred_check_branch
          %492 = sbr.rel (%p490) target = $region56
        $region55: #{tpu_custom_call.1} parent=11 // pred_region
          _
        $region56: #{tpu_custom_call.1} parent=11 // pred_fallthru
          _
        // Predicated region
        $region57: #{tpu_custom_call.1} parent=11 // pred_check
          %p493 = pneg %p297
        $region58: #{tpu_custom_call.1} parent=11 // pred_check_branch
          %495 = sbr.rel (%p493) target = $region60
        $region59: #{tpu_custom_call.1} parent=11 // pred_region
          _
        $region60: #{tpu_custom_call.1} parent=11 // pred_fallthru
          _
        // Predicated region
        $region61: #{tpu_custom_call.1} parent=11 // pred_check
          %p496 = pneg %p318
        $region62: #{tpu_custom_call.1} parent=11 // pred_check_branch
          %498 = sbr.rel (%p496) target = $region64
        $region63: #{tpu_custom_call.1} parent=11 // pred_region
          _
        $region64: #{tpu_custom_call.1} parent=11 // pred_fallthru
          _
        // Predicated region
        $region65: #{tpu_custom_call.1} parent=11 // pred_check
          %p499 = pneg %p339
        $region66: #{tpu_custom_call.1} parent=11 // pred_check_branch
          %501 = sbr.rel (%p499) target = $region68
        $region67: #{tpu_custom_call.1} parent=11 // pred_region
          _
        $region68: #{tpu_custom_call.1} parent=11 // pred_fallthru
          _
        // Predicated region
        $region69: #{tpu_custom_call.1} parent=11 // pred_check
          %p502 = pneg %p360
        $region70: #{tpu_custom_call.1} parent=11 // pred_check_branch
          %504 = sbr.rel (%p502) target = $region72
        $region71: #{tpu_custom_call.1} parent=11 // pred_region
          _
        $region72: #{tpu_custom_call.1} parent=11 // pred_fallthru
          _
      $region12: #{tpu_custom_call.1} parent=5 // pred_fallthru
        _
      %p505 = scmp.lt.s32.totalorder %s28, 4
      // Predicated region
      $region73: #{tpu_custom_call.1} parent=5 // pred_check
        %p506 = pneg %p505
      $region74: #{tpu_custom_call.1} parent=5 // pred_check_branch
        %508 = sbr.rel (%p506) target = $region76
      $region75: #{tpu_custom_call.1} parent=5 // pred_region
        _
      $region76: #{tpu_custom_call.1} parent=5 // pred_fallthru
        _
      %p509 = scmp.le.s32.totalorder 1, %s28
      %p510 = scmp.lt.s32.totalorder %s28, 5
      %p511 = pnand %p509, %p510
      %p512 = pneg %p511
      // Predicated region
      $region77: #{tpu_custom_call.1} parent=5 // pred_check
        _
      $region78: #{tpu_custom_call.1} parent=5 // pred_check_branch
        %514 = sbr.rel (%p511) target = $region80
      $region79: #{tpu_custom_call.1} parent=5 // pred_region
        %s515 = ssub.s32 %s28, 1
        // Predicated region
        $region81: #{tpu_custom_call.1} parent=79 // pred_check
          %p516 = pneg %p150
        $region82: #{tpu_custom_call.1} parent=79 // pred_check_branch
          %518 = sbr.rel (%p516) target = $region84
        $region83: #{tpu_custom_call.1} parent=79 // pred_region
          %519 = dma.done [#allocation5], 16
        $region84: #{tpu_custom_call.1} parent=79 // pred_fallthru
          _
        // Predicated region
        $region85: #{tpu_custom_call.1} parent=79 // pred_check
          %p520 = pneg %p171
        $region86: #{tpu_custom_call.1} parent=79 // pred_check_branch
          %522 = sbr.rel (%p520) target = $region88
        $region87: #{tpu_custom_call.1} parent=79 // pred_region
          %523 = dma.done [#allocation8], 256
        $region88: #{tpu_custom_call.1} parent=79 // pred_fallthru
          _
        // Predicated region
        $region89: #{tpu_custom_call.1} parent=79 // pred_check
          %p524 = pneg %p192
        $region90: #{tpu_custom_call.1} parent=79 // pred_check_branch
          %526 = sbr.rel (%p524) target = $region92
        $region91: #{tpu_custom_call.1} parent=79 // pred_region
          %527 = dma.done [#allocation8], 16
        $region92: #{tpu_custom_call.1} parent=79 // pred_fallthru
          _
        // Predicated region
        $region93: #{tpu_custom_call.1} parent=79 // pred_check
          %p528 = pneg %p213
        $region94: #{tpu_custom_call.1} parent=79 // pred_check_branch
          %530 = sbr.rel (%p528) target = $region96
        $region95: #{tpu_custom_call.1} parent=79 // pred_region
          %531 = dma.done [#allocation11], 256
        $region96: #{tpu_custom_call.1} parent=79 // pred_fallthru
          _
        // Predicated region
        $region97: #{tpu_custom_call.1} parent=79 // pred_check
          %p532 = pneg %p234
        $region98: #{tpu_custom_call.1} parent=79 // pred_check_branch
          %534 = sbr.rel (%p532) target = $region100
        $region99: #{tpu_custom_call.1} parent=79 // pred_region
          %535 = dma.done [#allocation11], 16
        $region100: #{tpu_custom_call.1} parent=79 // pred_fallthru
          _
        // Predicated region
        $region101: #{tpu_custom_call.1} parent=79 // pred_check
          %p536 = pneg %p255
        $region102: #{tpu_custom_call.1} parent=79 // pred_check_branch
          %538 = sbr.rel (%p536) target = $region104
        $region103: #{tpu_custom_call.1} parent=79 // pred_region
          %539 = dma.done [#allocation14], 16
        $region104: #{tpu_custom_call.1} parent=79 // pred_fallthru
          _
        %p540 = scmp.lt.s32.totalorder %s37, 1
        %s541 = scalar_select %p540, %s37, 1
        %s542 = smul.addr %s541, 4
        %s543 = smul.addr %s542, 8
        %s544 = scalar_lea.vmem %s0, %s543
        %p545 = pneg %p66
        %p546 = pneg %p63
        %p547 = pneg %p87
        %p548 = pneg %p84
        %p549 = pneg %p108
        %p550 = pneg %p105
        %p551 = pneg %p129
        %p552 = pneg %p126
        %p553 = pneg %p150
        %p554 = pneg %p147
        %p555 = pneg %p171
        %p556 = pneg %p168
        %p557 = pneg %p192
        %p558 = pneg %p189
        %p559 = pneg %p213
        %p560 = pneg %p210
        %p561 = pneg %p234
        %p562 = pneg %p231
        %p563 = pneg %p255
        %p564 = pneg %p252
        %p565 = pneg %p276
        %p566 = pneg %p273
        %p567 = pneg %p297
        %p568 = pneg %p294
        %p569 = pneg %p318
        %p570 = pneg %p315
        %p571 = pneg %p339
        %p572 = pneg %p336
        %p573 = pneg %p360
        %p574 = pneg %p357
        %p575 = pneg %p388
        %p576 = pneg %p385
        %s577 = sand.u32 %s375, 1
        %s578 = scalar_lea.sflag [#allocation6], %s577
        %s579 = sand.u32 %s375, 1
        %s580 = smul.addr %s579, 16
        %s581 = scalar_lea.vmem [#allocation15], %s580
        %p582 = scmp.lt.s32.totalorder %s37, 1
        %s583 = scalar_select %p582, %s37, 1
        %s584 = smul.addr %s583, 4
        %s585 = smul.addr %s584, 8
        %s586 = scalar_lea.vmem %s0, %s585
        %s587 = smul.u32 2, %s38
        %p589 = scmp.eq.s32.totalorder %s38, 0
        // Predicated region
        $region105: #{tpu_custom_call.1} parent=79 // pred_check
          %p590 = pneg %p589
        $region106: #{tpu_custom_call.1} parent=79 // pred_check_branch
          %592 = sbr.rel (%p590) target = $region108
        $region107: #{tpu_custom_call.1} parent=79 // pred_region
          %v593 = vld [vmem:[%s586] sm:$0xff]
          %v594 = vld [vmem:[%s586 + $0x8] sm:$0xff]
          %v595 = vld [vmem:[%s586 + $0x10] sm:$0xff]
          %v596 = vld [vmem:[%s586 + $0x18] sm:$0xff]
          %v597 = vld [vmem:[%s1] sm:$0x1]
          %v598 = vld [vmem:[%s2] sm:$0x1]
          %vm599 = vcmask 261120
          %v600 = vsel %vm599, %v593, 0.0
          %601 = vadd.xlane.f32.xlu0 %v600
          %v602 = vpop.xlane.xlu0 %601
          %v603 = vsel %vm599, %v594, 0.0
          %604 = vadd.xlane.f32.xlu0 %v603
          %v605 = vpop.xlane.xlu0 %604
          %v606 = vsel %vm599, %v595, 0.0
          %607 = vadd.xlane.f32.xlu0 %v606
          %v608 = vpop.xlane.xlu0 %607
          %v609 = vsel %vm599, %v596, 0.0
          %610 = vadd.xlane.f32.xlu0 %v609
          %v611 = vpop.xlane.xlu0 %610
          %v612 = vrcp.pop 32.0
          %v613 = vmul.f32 %v602, %v612
          %v614 = vmul.f32 %v605, %v612
          %v615 = vmul.f32 %v608, %v612
          %v616 = vmul.f32 %v611, %v612
          %v617 = vsub.f32 %v593, %v613
          %v618 = vsub.f32 %v594, %v614
          %v619 = vsub.f32 %v595, %v615
          %v620 = vsub.f32 %v596, %v616
          %v621 = vmul.f32 %v617, %v617
          %v622 = vmul.f32 %v618, %v618
          %v623 = vmul.f32 %v619, %v619
          %v624 = vmul.f32 %v620, %v620
          %v625 = vsel %vm599, %v621, 0.0
          %626 = vadd.xlane.f32.xlu0 %v625
          %v627 = vpop.xlane.xlu0 %626
          %v628 = vsel %vm599, %v622, 0.0
          %629 = vadd.xlane.f32.xlu0 %v628
          %v630 = vpop.xlane.xlu0 %629
          %v631 = vsel %vm599, %v623, 0.0
          %632 = vadd.xlane.f32.xlu0 %v631
          %v633 = vpop.xlane.xlu0 %632
          %v634 = vsel %vm599, %v624, 0.0
          %635 = vadd.xlane.f32.xlu0 %v634
          %v636 = vpop.xlane.xlu0 %635
          %v637 = vmul.f32 %v627, %v612
          %v638 = vmul.f32 %v630, %v612
          %v639 = vmul.f32 %v633, %v612
          %v640 = vmul.f32 %v636, %v612
          %v641 = vadd.f32 %v637, 1e-06
          %v642 = vadd.f32 %v638, 1e-06
          %v643 = vadd.f32 %v639, 1e-06
          %v644 = vadd.f32 %v640, 1e-06
          %v645 = vrsqrt.pop %v641
          %v646 = vrsqrt.pop %v642
          %v647 = vrsqrt.pop %v643
          %v648 = vrsqrt.pop %v644
          %v649 = vmul.f32 %v617, %v645
          %v650 = vmul.f32 %v618, %v646
          %v651 = vmul.f32 %v619, %v647
          %v652 = vmul.f32 %v620, %v648
          %v654 = vlaneseq
          %v655 = vshrl.u32 %v654, 7
          %v656 = vsub.s32 0, %v655
          %v657 = vrot.slane %v597, %v656
          %v659 = vmul.f32 %v649, %v657
          %v660 = vmul.f32 %v650, %v657
          %v661 = vmul.f32 %v651, %v657
          %v662 = vmul.f32 %v652, %v657
          %v664 = vlaneseq
          %v665 = vshrl.u32 %v664, 7
          %v666 = vsub.s32 0, %v665
          %v667 = vrot.slane %v598, %v666
          %v669 = vadd.f32 %v659, %v667
          %v670 = vadd.f32 %v660, %v667
          %v671 = vadd.f32 %v661, %v667
          %v672 = vadd.f32 %v662, %v667
          %v673 = vpack.c.bf16 %v670, %v669
          %v674 = vpack.c.bf16 %v672, %v671
          %675 = vst.msk [vmem:[#allocation3] sm:$0xff] %vm599, %v673
          %676 = vst.msk [vmem:[#allocation3 + $0x8] sm:$0xff] %vm599, %v674
          %v677 = vld [vmem:[#allocation7] sm:$0xf]
          %v678 = vld [vmem:[#allocation7 + $0x4] sm:$0xf]
          %v679 = vld [vmem:[#allocation7 + $0x8] sm:$0xf]
          %v680 = vld [vmem:[#allocation7 + $0xc] sm:$0xf]
          %v681 = vld [vmem:[#allocation9] sm:$0x1]
          %v683 = vlaneseq
          %v684 = vshrl.u32 %v683, 7
          %v685 = vsub.s32 0, %v684
          %v686 = vrot.slane %v681, %v685
          %v692 = vunpack.c.l.b16 %v677
          %v693 = vunpack.c.l.b16 %v678
          %v694 = vunpack.c.l.b16 %v679
          %v695 = vunpack.c.l.b16 %v680
          %v696 = vpack.c.b16 %v693, %v692
          %v697 = vpack.c.b16 %v695, %v694
          %v701 = vsel %vm599, %v673, 0
          %v704 = vsel %vm599, %v674, 0
          %706 = vmatprep.subr.bf16.mxu0 0
          %707 = vmatpush1.bf16.msra.mxu0 %v696
          %708 = vmatprep.subr.bf16.mxu0 0
          %709 = vmatpush1.bf16.msra.mxu0 %v697
          %710 = vmatprep.subr.bf16.mxu0 0
          %711 = vmatpush1.bf16.msra.mxu0 0
          %712 = vmatprep.subr.bf16.mxu0 0
          %713 = vmatpush1.bf16.msra.mxu0 0
          %714 = vmatprep.subr.bf16.mxu0 0
          %715 = vmatpush1.bf16.msra.mxu0 0
          %716 = vmatprep.subr.bf16.mxu0 0
          %717 = vmatpush1.bf16.msra.mxu0 0
          %718 = vmatprep.subr.bf16.mxu0 0
          %719 = vmatpush1.bf16.msra.mxu0 0
          %720 = vmatprep.subr.bf16.mxu0 0
          %721 = vmatpush1.bf16.msra.mxu0 0
          %722 = vmatprep.subr.bf16.mxu0 0
          %723 = vmatpush1.bf16.msra.mxu0 0
          %724 = vmatprep.subr.bf16.mxu0 0
          %725 = vmatpush1.bf16.msra.mxu0 0
          %726 = vmatprep.subr.bf16.mxu0 0
          %727 = vmatpush1.bf16.msra.mxu0 0
          %728 = vmatprep.subr.bf16.mxu0 0
          %729 = vmatpush1.bf16.msra.mxu0 0
          %730 = vmatprep.subr.bf16.mxu0 0
          %731 = vmatpush1.bf16.msra.mxu0 0
          %732 = vmatprep.subr.bf16.mxu0 0
          %733 = vmatpush1.bf16.msra.mxu0 0
          %734 = vmatprep.subr.bf16.mxu0 0
          %735 = vmatpush1.bf16.msra.mxu0 0
          %736 = vmatprep.subr.bf16.mxu0 0
          %737 = vmatpush1.bf16.msra.mxu0 0
          %738 = vmatprep.mubr.bf16.mxu0 0
          %739 = vmatmul.mubr.bf16.gmra.mrb[0].mxu0 %v701
          %v740 = vpop.f32.mrb[0].mxu0
          %v741 = vadd.f32 %v686, %v740
          %v742 = vpop.f32.mrb[0].mxu0
          %v743 = vpop.f32.mrb[0].mxu0
          %v744 = vadd.f32 %v686, %v743
          %v745 = vpop.f32.mrb[0].mxu0
          %746 = vmatprep.mubr.bf16.mxu0 0
          %747 = vmatmul.mubr.bf16.gmra.mrb[0].mxu0 %v704
          %v748 = vpop.f32.mrb[0].mxu0
          %v749 = vadd.f32 %v686, %v748
          %v750 = vpop.f32.mrb[0].mxu0
          %v751 = vpop.f32.mrb[0].mxu0
          %v752 = vadd.f32 %v686, %v751
          %v753 = vpop.f32.mrb[0].mxu0
          %754 = vdwg.mxu0
          %v755 = vpack.c.bf16 %v744, %v741
          %v756 = vpack.c.bf16 %v752, %v749
          %vm757 = vcmask 523264
          %758 = vst.msk [vmem:[#allocation2] sm:$0xff] %vm757, %v755
          %759 = vst.msk [vmem:[#allocation2 + $0x8] sm:$0xff] %vm757, %v756
        $region108: #{tpu_custom_call.1} parent=79 // pred_fallthru
          _
        %s760 = smul.u32 %s38, 16
        %s761 = scalar_lea.vmem %s586, %s760
        %v762 = vld [vmem:[%s761] sm:$0xff]
        %v763 = vld [vmem:[%s761 + $0x8] sm:$0xff]
        %s764 = sshra.s32 %s760, 4
        %s765 = sand.u32 %s760, 15
        %s766 = smul.addr %s764, 8
        %s767 = scalar_lea.vmem [#allocation3], %s766
        %v768 = vld [vmem:[%s767] sm:$0xff]
        %v769 = vld [vmem:[%s3] sm:$0xf]
        %v770 = vld [vmem:[%s3 + $0x4] sm:$0xf]
        %v771 = vld [vmem:[%s3 + $0x8] sm:$0xf]
        %v772 = vld [vmem:[%s3 + $0xc] sm:$0xf]
        %v773 = vld [vmem:[#allocation4] sm:$0x1]
        %v775 = vlaneseq
        %v776 = vshrl.u32 %v775, 7
        %v777 = vsub.s32 0, %v776
        %v778 = vrot.slane %v773, %v777
        %v784 = vunpack.c.l.b16 %v769
        %v785 = vunpack.c.l.b16 %v770
        %v786 = vunpack.c.l.b16 %v771
        %v787 = vunpack.c.l.b16 %v772
        %v788 = vpack.c.b16 %v785, %v784
        %v789 = vpack.c.b16 %v787, %v786
        %vm792 = vcmask 261120
        %v794 = vsel %vm792, %v768, 0
        %796 = vmatprep.subr.bf16.mxu0 0
        %797 = vmatpush1.bf16.msra.mxu0 %v788
        %798 = vmatprep.subr.bf16.mxu0 0
        %799 = vmatpush1.bf16.msra.mxu0 %v789
        %800 = vmatprep.subr.bf16.mxu0 0
        %801 = vmatpush1.bf16.msra.mxu0 0
        %802 = vmatprep.subr.bf16.mxu0 0
        %803 = vmatpush1.bf16.msra.mxu0 0
        %804 = vmatprep.subr.bf16.mxu0 0
        %805 = vmatpush1.bf16.msra.mxu0 0
        %806 = vmatprep.subr.bf16.mxu0 0
        %807 = vmatpush1.bf16.msra.mxu0 0
        %808 = vmatprep.subr.bf16.mxu0 0
        %809 = vmatpush1.bf16.msra.mxu0 0
        %810 = vmatprep.subr.bf16.mxu0 0
        %811 = vmatpush1.bf16.msra.mxu0 0
        %812 = vmatprep.subr.bf16.mxu0 0
        %813 = vmatpush1.bf16.msra.mxu0 0
        %814 = vmatprep.subr.bf16.mxu0 0
        %815 = vmatpush1.bf16.msra.mxu0 0
        %816 = vmatprep.subr.bf16.mxu0 0
        %817 = vmatpush1.bf16.msra.mxu0 0
        %818 = vmatprep.subr.bf16.mxu0 0
        %819 = vmatpush1.bf16.msra.mxu0 0
        %820 = vmatprep.subr.bf16.mxu0 0
        %821 = vmatpush1.bf16.msra.mxu0 0
        %822 = vmatprep.subr.bf16.mxu0 0
        %823 = vmatpush1.bf16.msra.mxu0 0
        %824 = vmatprep.subr.bf16.mxu0 0
        %825 = vmatpush1.bf16.msra.mxu0 0
        %826 = vmatprep.subr.bf16.mxu0 0
        %827 = vmatpush1.bf16.msra.mxu0 0
        %828 = vmatprep.mubr.bf16.mxu0 0
        %829 = vmatmul.mubr.bf16.gmra.mrb[0].mxu0 %v794
        %v830 = vpop.f32.mrb[0].mxu0
        %v831 = vadd.f32 %v778, %v830
        %v832 = vpop.f32.mrb[0].mxu0
        %v833 = vpop.f32.mrb[0].mxu0
        %v834 = vadd.f32 %v778, %v833
        %v835 = vpop.f32.mrb[0].mxu0
        %836 = vdwg.mxu0
        %v837 = vpack.c.bf16 %v834, %v831
        %v838 = vld [vmem:[#allocation2] sm:$0xff]
        %v839 = vld [vmem:[#allocation2 + $0x8] sm:$0xff]
        %vm840 = vcmask 64512
        %v842 = vsel %vm840, %v837, 0
        %v845 = vsel %vm840, %v838, 0
        %v848 = vsel %vm840, %v839, 0
        %850 = vmatprep.subr.bf16.mxu0 0
        %851 = vmatpush1.bf16.xpose.msra.mxu0 %v845
        %852 = vmatprep.subr.bf16.mxu0 0
        %853 = vmatpush1.bf16.xpose.msra.mxu0 %v848
        %854 = vmatprep.subr.bf16.mxu0 0
        %855 = vmatpush1.bf16.xpose.msra.mxu0 0
        %856 = vmatprep.subr.bf16.mxu0 0
        %857 = vmatpush1.bf16.xpose.msra.mxu0 0
        %858 = vmatprep.subr.bf16.mxu0 0
        %859 = vmatpush1.bf16.xpose.msra.mxu0 0
        %860 = vmatprep.subr.bf16.mxu0 0
        %861 = vmatpush1.bf16.xpose.msra.mxu0 0
        %862 = vmatprep.subr.bf16.mxu0 0
        %863 = vmatpush1.bf16.xpose.msra.mxu0 0
        %864 = vmatprep.subr.bf16.mxu0 0
        %865 = vmatpush1.bf16.xpose.msra.mxu0 0
        %866 = vmatprep.subr.bf16.mxu0 0
        %867 = vmatpush1.bf16.xpose.msra.mxu0 0
        %868 = vmatprep.subr.bf16.mxu0 0
        %869 = vmatpush1.bf16.xpose.msra.mxu0 0
        %870 = vmatprep.subr.bf16.mxu0 0
        %871 = vmatpush1.bf16.xpose.msra.mxu0 0
        %872 = vmatprep.subr.bf16.mxu0 0
        %873 = vmatpush1.bf16.xpose.msra.mxu0 0
        %874 = vmatprep.subr.bf16.mxu0 0
        %875 = vmatpush1.bf16.xpose.msra.mxu0 0
        %876 = vmatprep.subr.bf16.mxu0 0
        %877 = vmatpush1.bf16.xpose.msra.mxu0 0
        %878 = vmatprep.subr.bf16.mxu0 0
        %879 = vmatpush1.bf16.xpose.msra.mxu0 0
        %880 = vmatprep.subr.bf16.mxu0 0
        %881 = vmatpush1.bf16.xpose.msra.mxu0 0
        %882 = vmatprep.mubr.bf16.mxu0 0
        %883 = vmatmul.mubr.bf16.gmra.mrb[0].mxu0 %v842
        %v884 = vpop.f32.mrb[0].mxu0
        %v885 = vadd.f32 0.0, %v884
        %v886 = vpop.f32.mrb[0].mxu0
        %v887 = vpop.f32.mrb[0].mxu0
        %v888 = vadd.f32 0.0, %v887
        %v889 = vpop.f32.mrb[0].mxu0
        %890 = vdwg.mxu0
        %v891 = vsel %vm792, %v885, -inf
        %892 = vmax.xlane.f32.xlu0 %v891
        %v893 = vpop.xlane.xlu0 %892
        %v894 = vsel %vm792, %v888, -inf
        %895 = vmax.xlane.f32.xlu0 %v894
        %v896 = vpop.xlane.xlu0 %895
        %v897 = vsub.f32 %v885, %v893
        %v898 = vsub.f32 %v888, %v896
        %v899 = vmul.f32 %v897, 1.442695
        %v900 = vpow.pop %v899
        %v901 = vmul.f32 %v898, 1.442695
        %v902 = vpow.pop %v901
        %v903 = vsel %vm792, %v900, 0.0
        %904 = vadd.xlane.f32.xlu0 %v903
        %v905 = vpop.xlane.xlu0 %904
        %v906 = vsel %vm792, %v902, 0.0
        %907 = vadd.xlane.f32.xlu0 %v906
        %v908 = vpop.xlane.xlu0 %907
        %v909 = vrcp.pop %v905
        %v910 = vrcp.pop %v908
        %v911 = vpack.c.bf16 %v902, %v900
        %914 = vrot.lane.b32.xlu0 %v838, 96
        %v915 = vpop.permute.xlu0 %914
        %916 = vrot.lane.b32.xlu0 %v839, 96
        %v917 = vpop.permute.xlu0 %916
        %v921 = vsel %vm792, %v911, 0
        %923 = vmatprep.subr.bf16.mxu0 0
        %924 = vmatpush1.bf16.msra.mxu0 %v915
        %925 = vmatprep.subr.bf16.mxu0 0
        %926 = vmatpush1.bf16.msra.mxu0 %v917
        %927 = vmatprep.subr.bf16.mxu0 0
        %928 = vmatpush1.bf16.msra.mxu0 0
        %929 = vmatprep.subr.bf16.mxu0 0
        %930 = vmatpush1.bf16.msra.mxu0 0
        %931 = vmatprep.subr.bf16.mxu0 0
        %932 = vmatpush1.bf16.msra.mxu0 0
        %933 = vmatprep.subr.bf16.mxu0 0
        %934 = vmatpush1.bf16.msra.mxu0 0
        %935 = vmatprep.subr.bf16.mxu0 0
        %936 = vmatpush1.bf16.msra.mxu0 0
        %937 = vmatprep.subr.bf16.mxu0 0
        %938 = vmatpush1.bf16.msra.mxu0 0
        %939 = vmatprep.subr.bf16.mxu0 0
        %940 = vmatpush1.bf16.msra.mxu0 0
        %941 = vmatprep.subr.bf16.mxu0 0
        %942 = vmatpush1.bf16.msra.mxu0 0
        %943 = vmatprep.subr.bf16.mxu0 0
        %944 = vmatpush1.bf16.msra.mxu0 0
        %945 = vmatprep.subr.bf16.mxu0 0
        %946 = vmatpush1.bf16.msra.mxu0 0
        %947 = vmatprep.subr.bf16.mxu0 0
        %948 = vmatpush1.bf16.msra.mxu0 0
        %949 = vmatprep.subr.bf16.mxu0 0
        %950 = vmatpush1.bf16.msra.mxu0 0
        %951 = vmatprep.subr.bf16.mxu0 0
        %952 = vmatpush1.bf16.msra.mxu0 0
        %953 = vmatprep.subr.bf16.mxu0 0
        %954 = vmatpush1.bf16.msra.mxu0 0
        %955 = vmatprep.mubr.bf16.mxu0 0
        %956 = vmatmul.mubr.bf16.gmra.mrb[0].mxu0 %v921
        %v957 = vpop.f32.mrb[0].mxu0
        %v958 = vadd.f32 0.0, %v957
        %v959 = vpop.f32.mrb[0].mxu0
        %v960 = vpop.f32.mrb[0].mxu0
        %v961 = vadd.f32 0.0, %v960
        %v962 = vpop.f32.mrb[0].mxu0
        %963 = vdwg.mxu0
        %v964 = vmul.f32 %v958, %v909
        %v965 = vmul.f32 %v961, %v910
        %967 = vrot.lane.b32.xlu0 %v837, 120
        %v968 = vpop.permute.xlu0 %967
        %969 = vrot.lane.b32.xlu0 %v838, 120
        %v970 = vpop.permute.xlu0 %969
        %971 = vrot.lane.b32.xlu0 %v839, 120
        %v972 = vpop.permute.xlu0 %971
        %v974 = vsel %vm840, %v968, 0
        %v977 = vsel %vm840, %v970, 0
        %v980 = vsel %vm840, %v972, 0
        %982 = vmatprep.subr.bf16.mxu0 0
        %983 = vmatpush1.bf16.xpose.msra.mxu0 %v977
        %984 = vmatprep.subr.bf16.mxu0 0
        %985 = vmatpush1.bf16.xpose.msra.mxu0 %v980
        %986 = vmatprep.subr.bf16.mxu0 0
        %987 = vmatpush1.bf16.xpose.msra.mxu0 0
        %988 = vmatprep.subr.bf16.mxu0 0
        %989 = vmatpush1.bf16.xpose.msra.mxu0 0
        %990 = vmatprep.subr.bf16.mxu0 0
        %991 = vmatpush1.bf16.xpose.msra.mxu0 0
        %992 = vmatprep.subr.bf16.mxu0 0
        %993 = vmatpush1.bf16.xpose.msra.mxu0 0
        %994 = vmatprep.subr.bf16.mxu0 0
        %995 = vmatpush1.bf16.xpose.msra.mxu0 0
        %996 = vmatprep.subr.bf16.mxu0 0
        %997 = vmatpush1.bf16.xpose.msra.mxu0 0
        %998 = vmatprep.subr.bf16.mxu0 0
        %999 = vmatpush1.bf16.xpose.msra.mxu0 0
        %1000 = vmatprep.subr.bf16.mxu0 0
        %1001 = vmatpush1.bf16.xpose.msra.mxu0 0
        %1002 = vmatprep.subr.bf16.mxu0 0
        %1003 = vmatpush1.bf16.xpose.msra.mxu0 0
        %1004 = vmatprep.subr.bf16.mxu0 0
        %1005 = vmatpush1.bf16.xpose.msra.mxu0 0
        %1006 = vmatprep.subr.bf16.mxu0 0
        %1007 = vmatpush1.bf16.xpose.msra.mxu0 0
        %1008 = vmatprep.subr.bf16.mxu0 0
        %1009 = vmatpush1.bf16.xpose.msra.mxu0 0
        %1010 = vmatprep.subr.bf16.mxu0 0
        %1011 = vmatpush1.bf16.xpose.msra.mxu0 0
        %1012 = vmatprep.subr.bf16.mxu0 0
        %1013 = vmatpush1.bf16.xpose.msra.mxu0 0
        %1014 = vmatprep.mubr.bf16.mxu0 0
        %1015 = vmatmul.mubr.bf16.gmra.mrb[0].mxu0 %v974
        %v1016 = vpop.f32.mrb[0].mxu0
        %v1017 = vadd.f32 0.0, %v1016
        %v1018 = vpop.f32.mrb[0].mxu0
        %v1019 = vpop.f32.mrb[0].mxu0
        %v1020 = vadd.f32 0.0, %v1019
        %v1021 = vpop.f32.mrb[0].mxu0
        %1022 = vdwg.mxu0
        %v1023 = vsel %vm792, %v1017, -inf
        %1024 = vmax.xlane.f32.xlu0 %v1023
        %v1025 = vpop.xlane.xlu0 %1024
        %v1026 = vsel %vm792, %v1020, -inf
        %1027 = vmax.xlane.f32.xlu0 %v1026
        %v1028 = vpop.xlane.xlu0 %1027
        %v1029 = vsub.f32 %v1017, %v1025
        %v1030 = vsub.f32 %v1020, %v1028
        %v1031 = vmul.f32 %v1029, 1.442695
        %v1032 = vpow.pop %v1031
        %v1033 = vmul.f32 %v1030, 1.442695
        %v1034 = vpow.pop %v1033
        %v1035 = vsel %vm792, %v1032, 0.0
        %1036 = vadd.xlane.f32.xlu0 %v1035
        %v1037 = vpop.xlane.xlu0 %1036
        %v1038 = vsel %vm792, %v1034, 0.0
        %1039 = vadd.xlane.f32.xlu0 %v1038
        %v1040 = vpop.xlane.xlu0 %1039
        %v1041 = vrcp.pop %v1037
        %v1042 = vrcp.pop %v1040
        %v1043 = vpack.c.bf16 %v1034, %v1032
        %1044 = vrot.lane.b32.xlu0 %v838, 88
        %v1045 = vpop.permute.xlu0 %1044
        %1046 = vrot.lane.b32.xlu0 %v839, 88
        %v1047 = vpop.permute.xlu0 %1046
        %v1051 = vsel %vm792, %v1043, 0
        %1053 = vmatprep.subr.bf16.mxu0 0
        %1054 = vmatpush1.bf16.msra.mxu0 %v1045
        %1055 = vmatprep.subr.bf16.mxu0 0
        %1056 = vmatpush1.bf16.msra.mxu0 %v1047
        %1057 = vmatprep.subr.bf16.mxu0 0
        %1058 = vmatpush1.bf16.msra.mxu0 0
        %1059 = vmatprep.subr.bf16.mxu0 0
        %1060 = vmatpush1.bf16.msra.mxu0 0
        %1061 = vmatprep.subr.bf16.mxu0 0
        %1062 = vmatpush1.bf16.msra.mxu0 0
        %1063 = vmatprep.subr.bf16.mxu0 0
        %1064 = vmatpush1.bf16.msra.mxu0 0
        %1065 = vmatprep.subr.bf16.mxu0 0
        %1066 = vmatpush1.bf16.msra.mxu0 0
        %1067 = vmatprep.subr.bf16.mxu0 0
        %1068 = vmatpush1.bf16.msra.mxu0 0
        %1069 = vmatprep.subr.bf16.mxu0 0
        %1070 = vmatpush1.bf16.msra.mxu0 0
        %1071 = vmatprep.subr.bf16.mxu0 0
        %1072 = vmatpush1.bf16.msra.mxu0 0
        %1073 = vmatprep.subr.bf16.mxu0 0
        %1074 = vmatpush1.bf16.msra.mxu0 0
        %1075 = vmatprep.subr.bf16.mxu0 0
        %1076 = vmatpush1.bf16.msra.mxu0 0
        %1077 = vmatprep.subr.bf16.mxu0 0
        %1078 = vmatpush1.bf16.msra.mxu0 0
        %1079 = vmatprep.subr.bf16.mxu0 0
        %1080 = vmatpush1.bf16.msra.mxu0 0
        %1081 = vmatprep.subr.bf16.mxu0 0
        %1082 = vmatpush1.bf16.msra.mxu0 0
        %1083 = vmatprep.subr.bf16.mxu0 0
        %1084 = vmatpush1.bf16.msra.mxu0 0
        %1085 = vmatprep.mubr.bf16.mxu0 0
        %1086 = vmatmul.mubr.bf16.gmra.mrb[0].mxu0 %v1051
        %v1087 = vpop.f32.mrb[0].mxu0
        %v1088 = vadd.f32 0.0, %v1087
        %v1089 = vpop.f32.mrb[0].mxu0
        %v1090 = vpop.f32.mrb[0].mxu0
        %v1091 = vadd.f32 0.0, %v1090
        %v1092 = vpop.f32.mrb[0].mxu0
        %1093 = vdwg.mxu0
        %v1094 = vmul.f32 %v1088, %v1041
        %v1095 = vmul.f32 %v1091, %v1042
        %1096 = vrot.lane.b32.xlu0 %v837, 112
        %v1097 = vpop.permute.xlu0 %1096
        %1098 = vrot.lane.b32.xlu0 %v838, 112
        %v1099 = vpop.permute.xlu0 %1098
        %1100 = vrot.lane.b32.xlu0 %v839, 112
        %v1101 = vpop.permute.xlu0 %1100
        %v1103 = vsel %vm840, %v1097, 0
        %v1106 = vsel %vm840, %v1099, 0
        %v1109 = vsel %vm840, %v1101, 0
        %1111 = vmatprep.subr.bf16.mxu0 0
        %1112 = vmatpush1.bf16.xpose.msra.mxu0 %v1106
        %1113 = vmatprep.subr.bf16.mxu0 0
        %1114 = vmatpush1.bf16.xpose.msra.mxu0 %v1109
        %1115 = vmatprep.subr.bf16.mxu0 0
        %1116 = vmatpush1.bf16.xpose.msra.mxu0 0
        %1117 = vmatprep.subr.bf16.mxu0 0
        %1118 = vmatpush1.bf16.xpose.msra.mxu0 0
        %1119 = vmatprep.subr.bf16.mxu0 0
        %1120 = vmatpush1.bf16.xpose.msra.mxu0 0
        %1121 = vmatprep.subr.bf16.mxu0 0
        %1122 = vmatpush1.bf16.xpose.msra.mxu0 0
        %1123 = vmatprep.subr.bf16.mxu0 0
        %1124 = vmatpush1.bf16.xpose.msra.mxu0 0
        %1125 = vmatprep.subr.bf16.mxu0 0
        %1126 = vmatpush1.bf16.xpose.msra.mxu0 0
        %1127 = vmatprep.subr.bf16.mxu0 0
        %1128 = vmatpush1.bf16.xpose.msra.mxu0 0
        %1129 = vmatprep.subr.bf16.mxu0 0
        %1130 = vmatpush1.bf16.xpose.msra.mxu0 0
        %1131 = vmatprep.subr.bf16.mxu0 0
        %1132 = vmatpush1.bf16.xpose.msra.mxu0 0
        %1133 = vmatprep.subr.bf16.mxu0 0
        %1134 = vmatpush1.bf16.xpose.msra.mxu0 0
        %1135 = vmatprep.subr.bf16.mxu0 0
        %1136 = vmatpush1.bf16.xpose.msra.mxu0 0
        %1137 = vmatprep.subr.bf16.mxu0 0
        %1138 = vmatpush1.bf16.xpose.msra.mxu0 0
        %1139 = vmatprep.subr.bf16.mxu0 0
        %1140 = vmatpush1.bf16.xpose.msra.mxu0 0
        %1141 = vmatprep.subr.bf16.mxu0 0
        %1142 = vmatpush1.bf16.xpose.msra.mxu0 0
        %1143 = vmatprep.mubr.bf16.mxu0 0
        %1144 = vmatmul.mubr.bf16.gmra.mrb[0].mxu0 %v1103
        %v1145 = vpop.f32.mrb[0].mxu0
        %v1146 = vadd.f32 0.0, %v1145
        %v1147 = vpop.f32.mrb[0].mxu0
        %v1148 = vpop.f32.mrb[0].mxu0
        %v1149 = vadd.f32 0.0, %v1148
        %v1150 = vpop.f32.mrb[0].mxu0
        %1151 = vdwg.mxu0
        %v1152 = vsel %vm792, %v1146, -inf
        %1153 = vmax.xlane.f32.xlu0 %v1152
        %v1154 = vpop.xlane.xlu0 %1153
        %v1155 = vsel %vm792, %v1149, -inf
        %1156 = vmax.xlane.f32.xlu0 %v1155
        %v1157 = vpop.xlane.xlu0 %1156
        %v1158 = vsub.f32 %v1146, %v1154
        %v1159 = vsub.f32 %v1149, %v1157
        %v1160 = vmul.f32 %v1158, 1.442695
        %v1161 = vpow.pop %v1160
        %v1162 = vmul.f32 %v1159, 1.442695
        %v1163 = vpow.pop %v1162
        %v1164 = vsel %vm792, %v1161, 0.0
        %1165 = vadd.xlane.f32.xlu0 %v1164
        %v1166 = vpop.xlane.xlu0 %1165
        %v1167 = vsel %vm792, %v1163, 0.0
        %1168 = vadd.xlane.f32.xlu0 %v1167
        %v1169 = vpop.xlane.xlu0 %1168
        %v1170 = vrcp.pop %v1166
        %v1171 = vrcp.pop %v1169
        %v1172 = vpack.c.bf16 %v1163, %v1161
        %1173 = vrot.lane.b32.xlu0 %v838, 80
        %v1174 = vpop.permute.xlu0 %1173
        %1175 = vrot.lane.b32.xlu0 %v839, 80
        %v1176 = vpop.permute.xlu0 %1175
        %v1180 = vsel %vm792, %v1172, 0
        %1182 = vmatprep.subr.bf16.mxu0 0
        %1183 = vmatpush1.bf16.msra.mxu0 %v1174
        %1184 = vmatprep.subr.bf16.mxu0 0
        %1185 = vmatpush1.bf16.msra.mxu0 %v1176
        %1186 = vmatprep.subr.bf16.mxu0 0
        %1187 = vmatpush1.bf16.msra.mxu0 0
        %1188 = vmatprep.subr.bf16.mxu0 0
        %1189 = vmatpush1.bf16.msra.mxu0 0
        %1190 = vmatprep.subr.bf16.mxu0 0
        %1191 = vmatpush1.bf16.msra.mxu0 0
        %1192 = vmatprep.subr.bf16.mxu0 0
        %1193 = vmatpush1.bf16.msra.mxu0 0
        %1194 = vmatprep.subr.bf16.mxu0 0
        %1195 = vmatpush1.bf16.msra.mxu0 0
        %1196 = vmatprep.subr.bf16.mxu0 0
        %1197 = vmatpush1.bf16.msra.mxu0 0
        %1198 = vmatprep.subr.bf16.mxu0 0
        %1199 = vmatpush1.bf16.msra.mxu0 0
        %1200 = vmatprep.subr.bf16.mxu0 0
        %1201 = vmatpush1.bf16.msra.mxu0 0
        %1202 = vmatprep.subr.bf16.mxu0 0
        %1203 = vmatpush1.bf16.msra.mxu0 0
        %1204 = vmatprep.subr.bf16.mxu0 0
        %1205 = vmatpush1.bf16.msra.mxu0 0
        %1206 = vmatprep.subr.bf16.mxu0 0
        %1207 = vmatpush1.bf16.msra.mxu0 0
        %1208 = vmatprep.subr.bf16.mxu0 0
        %1209 = vmatpush1.bf16.msra.mxu0 0
        %1210 = vmatprep.subr.bf16.mxu0 0
        %1211 = vmatpush1.bf16.msra.mxu0 0
        %1212 = vmatprep.subr.bf16.mxu0 0
        %1213 = vmatpush1.bf16.msra.mxu0 0
        %1214 = vmatprep.mubr.bf16.mxu0 0
        %1215 = vmatmul.mubr.bf16.gmra.mrb[0].mxu0 %v1180
        %v1216 = vpop.f32.mrb[0].mxu0
        %v1217 = vadd.f32 0.0, %v1216
        %v1218 = vpop.f32.mrb[0].mxu0
        %v1219 = vpop.f32.mrb[0].mxu0
        %v1220 = vadd.f32 0.0, %v1219
        %v1221 = vpop.f32.mrb[0].mxu0
        %1222 = vdwg.mxu0
        %v1223 = vmul.f32 %v1217, %v1170
        %v1224 = vmul.f32 %v1220, %v1171
        %1225 = vrot.lane.b32.xlu0 %v837, 104
        %v1226 = vpop.permute.xlu0 %1225
        %1227 = vrot.lane.b32.xlu0 %v838, 104
        %v1228 = vpop.permute.xlu0 %1227
        %1229 = vrot.lane.b32.xlu0 %v839, 104
        %v1230 = vpop.permute.xlu0 %1229
        %v1232 = vsel %vm840, %v1226, 0
        %v1235 = vsel %vm840, %v1228, 0
        %v1238 = vsel %vm840, %v1230, 0
        %1240 = vmatprep.subr.bf16.mxu0 0
        %1241 = vmatpush1.bf16.xpose.msra.mxu0 %v1235
        %1242 = vmatprep.subr.bf16.mxu0 0
        %1243 = vmatpush1.bf16.xpose.msra.mxu0 %v1238
        %1244 = vmatprep.subr.bf16.mxu0 0
        %1245 = vmatpush1.bf16.xpose.msra.mxu0 0
        %1246 = vmatprep.subr.bf16.mxu0 0
        %1247 = vmatpush1.bf16.xpose.msra.mxu0 0
        %1248 = vmatprep.subr.bf16.mxu0 0
        %1249 = vmatpush1.bf16.xpose.msra.mxu0 0
        %1250 = vmatprep.subr.bf16.mxu0 0
        %1251 = vmatpush1.bf16.xpose.msra.mxu0 0
        %1252 = vmatprep.subr.bf16.mxu0 0
        %1253 = vmatpush1.bf16.xpose.msra.mxu0 0
        %1254 = vmatprep.subr.bf16.mxu0 0
        %1255 = vmatpush1.bf16.xpose.msra.mxu0 0
        %1256 = vmatprep.subr.bf16.mxu0 0
        %1257 = vmatpush1.bf16.xpose.msra.mxu0 0
        %1258 = vmatprep.subr.bf16.mxu0 0
        %1259 = vmatpush1.bf16.xpose.msra.mxu0 0
        %1260 = vmatprep.subr.bf16.mxu0 0
        %1261 = vmatpush1.bf16.xpose.msra.mxu0 0
        %1262 = vmatprep.subr.bf16.mxu0 0
        %1263 = vmatpush1.bf16.xpose.msra.mxu0 0
        %1264 = vmatprep.subr.bf16.mxu0 0
        %1265 = vmatpush1.bf16.xpose.msra.mxu0 0
        %1266 = vmatprep.subr.bf16.mxu0 0
        %1267 = vmatpush1.bf16.xpose.msra.mxu0 0
        %1268 = vmatprep.subr.bf16.mxu0 0
        %1269 = vmatpush1.bf16.xpose.msra.mxu0 0
        %1270 = vmatprep.subr.bf16.mxu0 0
        %1271 = vmatpush1.bf16.xpose.msra.mxu0 0
        %1272 = vmatprep.mubr.bf16.mxu0 0
        %1273 = vmatmul.mubr.bf16.gmra.mrb[0].mxu0 %v1232
        %v1274 = vpop.f32.mrb[0].mxu0
        %v1275 = vadd.f32 0.0, %v1274
        %v1276 = vpop.f32.mrb[0].mxu0
        %v1277 = vpop.f32.mrb[0].mxu0
        %v1278 = vadd.f32 0.0, %v1277
        %v1279 = vpop.f32.mrb[0].mxu0
        %1280 = vdwg.mxu0
        %v1281 = vsel %vm792, %v1275, -inf
        %1282 = vmax.xlane.f32.xlu0 %v1281
        %v1283 = vpop.xlane.xlu0 %1282
        %v1284 = vsel %vm792, %v1278, -inf
        %1285 = vmax.xlane.f32.xlu0 %v1284
        %v1286 = vpop.xlane.xlu0 %1285
        %v1287 = vsub.f32 %v1275, %v1283
        %v1288 = vsub.f32 %v1278, %v1286
        %v1289 = vmul.f32 %v1287, 1.442695
        %v1290 = vpow.pop %v1289
        %v1291 = vmul.f32 %v1288, 1.442695
        %v1292 = vpow.pop %v1291
        %v1293 = vsel %vm792, %v1290, 0.0
        %1294 = vadd.xlane.f32.xlu0 %v1293
        %v1295 = vpop.xlane.xlu0 %1294
        %v1296 = vsel %vm792, %v1292, 0.0
        %1297 = vadd.xlane.f32.xlu0 %v1296
        %v1298 = vpop.xlane.xlu0 %1297
        %v1299 = vrcp.pop %v1295
        %v1300 = vrcp.pop %v1298
        %v1301 = vpack.c.bf16 %v1292, %v1290
        %1302 = vrot.lane.b32.xlu0 %v838, 72
        %v1303 = vpop.permute.xlu0 %1302
        %1304 = vrot.lane.b32.xlu0 %v839, 72
        %v1305 = vpop.permute.xlu0 %1304
        %v1309 = vsel %vm792, %v1301, 0
        %1311 = vmatprep.subr.bf16.mxu0 0
        %1312 = vmatpush1.bf16.msra.mxu0 %v1303
        %1313 = vmatprep.subr.bf16.mxu0 0
        %1314 = vmatpush1.bf16.msra.mxu0 %v1305
        %1315 = vmatprep.subr.bf16.mxu0 0
        %1316 = vmatpush1.bf16.msra.mxu0 0
        %1317 = vmatprep.subr.bf16.mxu0 0
        %1318 = vmatpush1.bf16.msra.mxu0 0
        %1319 = vmatprep.subr.bf16.mxu0 0
        %1320 = vmatpush1.bf16.msra.mxu0 0
        %1321 = vmatprep.subr.bf16.mxu0 0
        %1322 = vmatpush1.bf16.msra.mxu0 0
        %1323 = vmatprep.subr.bf16.mxu0 0
        %1324 = vmatpush1.bf16.msra.mxu0 0
        %1325 = vmatprep.subr.bf16.mxu0 0
        %1326 = vmatpush1.bf16.msra.mxu0 0
        %1327 = vmatprep.subr.bf16.mxu0 0
        %1328 = vmatpush1.bf16.msra.mxu0 0
        %1329 = vmatprep.subr.bf16.mxu0 0
        %1330 = vmatpush1.bf16.msra.mxu0 0
        %1331 = vmatprep.subr.bf16.mxu0 0
        %1332 = vmatpush1.bf16.msra.mxu0 0
        %1333 = vmatprep.subr.bf16.mxu0 0
        %1334 = vmatpush1.bf16.msra.mxu0 0
        %1335 = vmatprep.subr.bf16.mxu0 0
        %1336 = vmatpush1.bf16.msra.mxu0 0
        %1337 = vmatprep.subr.bf16.mxu0 0
        %1338 = vmatpush1.bf16.msra.mxu0 0
        %1339 = vmatprep.subr.bf16.mxu0 0
        %1340 = vmatpush1.bf16.msra.mxu0 0
        %1341 = vmatprep.subr.bf16.mxu0 0
        %1342 = vmatpush1.bf16.msra.mxu0 0
        %1343 = vmatprep.mubr.bf16.mxu0 0
        %1344 = vmatmul.mubr.bf16.gmra.mrb[0].mxu0 %v1309
        %v1345 = vpop.f32.mrb[0].mxu0
        %v1346 = vadd.f32 0.0, %v1345
        %v1347 = vpop.f32.mrb[0].mxu0
        %v1348 = vpop.f32.mrb[0].mxu0
        %v1349 = vadd.f32 0.0, %v1348
        %v1350 = vpop.f32.mrb[0].mxu0
        %1351 = vdwg.mxu0
        %v1352 = vmul.f32 %v1346, %v1299
        %v1353 = vmul.f32 %v1349, %v1300
        %1356 = vrot.lane.b32.xlu0 %v1094, 8
        %v1357 = vpop.permute.xlu0 %1356
        %1358 = vrot.lane.b32.xlu0 %v1095, 8
        %v1359 = vpop.permute.xlu0 %1358
        %1364 = vrot.lane.b32.xlu0 %v1223, 16
        %v1365 = vpop.permute.xlu0 %1364
        %1366 = vrot.lane.b32.xlu0 %v1224, 16
        %v1367 = vpop.permute.xlu0 %1366
        %1372 = vrot.lane.b32.xlu0 %v1352, 24
        %v1373 = vpop.permute.xlu0 %1372
        %1374 = vrot.lane.b32.xlu0 %v1353, 24
        %v1375 = vpop.permute.xlu0 %1374
        %v1378 = vsel %vm840, %v964, %v1357
        %v1379 = vsel %vm840, %v965, %v1359
        %vm1380 = vcmask 130048
        %v1381 = vsel %vm1380, %v1378, %v1365
        %v1382 = vsel %vm1380, %v1379, %v1367
        %vm1383 = vcmask 195584
        %v1384 = vsel %vm1383, %v1381, %v1373
        %v1385 = vsel %vm1383, %v1382, %v1375
        %v1386 = vpack.c.bf16 %v1385, %v1384
        %v1387 = vld [vmem:[#allocation10] sm:$0xf]
        %v1388 = vld [vmem:[#allocation10 + $0x4] sm:$0xf]
        %v1389 = vld [vmem:[#allocation10 + $0x8] sm:$0xf]
        %v1390 = vld [vmem:[#allocation10 + $0xc] sm:$0xf]
        %v1391 = vld [vmem:[#allocation12] sm:$0x1]
        %v1393 = vlaneseq
        %v1394 = vshrl.u32 %v1393, 7
        %v1395 = vsub.s32 0, %v1394
        %v1396 = vrot.slane %v1391, %v1395
        %v1402 = vunpack.c.l.b16 %v1387
        %v1403 = vunpack.c.l.b16 %v1388
        %v1404 = vunpack.c.l.b16 %v1389
        %v1405 = vunpack.c.l.b16 %v1390
        %v1406 = vpack.c.b16 %v1403, %v1402
        %v1407 = vpack.c.b16 %v1405, %v1404
        %v1411 = vsel %vm792, %v1386, 0
        %1413 = vmatprep.subr.bf16.mxu0 0
        %1414 = vmatpush1.bf16.msra.mxu0 %v1406
        %1415 = vmatprep.subr.bf16.mxu0 0
        %1416 = vmatpush1.bf16.msra.mxu0 %v1407
        %1417 = vmatprep.subr.bf16.mxu0 0
        %1418 = vmatpush1.bf16.msra.mxu0 0
        %1419 = vmatprep.subr.bf16.mxu0 0
        %1420 = vmatpush1.bf16.msra.mxu0 0
        %1421 = vmatprep.subr.bf16.mxu0 0
        %1422 = vmatpush1.bf16.msra.mxu0 0
        %1423 = vmatprep.subr.bf16.mxu0 0
        %1424 = vmatpush1.bf16.msra.mxu0 0
        %1425 = vmatprep.subr.bf16.mxu0 0
        %1426 = vmatpush1.bf16.msra.mxu0 0
        %1427 = vmatprep.subr.bf16.mxu0 0
        %1428 = vmatpush1.bf16.msra.mxu0 0
        %1429 = vmatprep.subr.bf16.mxu0 0
        %1430 = vmatpush1.bf16.msra.mxu0 0
        %1431 = vmatprep.subr.bf16.mxu0 0
        %1432 = vmatpush1.bf16.msra.mxu0 0
        %1433 = vmatprep.subr.bf16.mxu0 0
        %1434 = vmatpush1.bf16.msra.mxu0 0
        %1435 = vmatprep.subr.bf16.mxu0 0
        %1436 = vmatpush1.bf16.msra.mxu0 0
        %1437 = vmatprep.subr.bf16.mxu0 0
        %1438 = vmatpush1.bf16.msra.mxu0 0
        %1439 = vmatprep.subr.bf16.mxu0 0
        %1440 = vmatpush1.bf16.msra.mxu0 0
        %1441 = vmatprep.subr.bf16.mxu0 0
        %1442 = vmatpush1.bf16.msra.mxu0 0
        %1443 = vmatprep.subr.bf16.mxu0 0
        %1444 = vmatpush1.bf16.msra.mxu0 0
        %1445 = vmatprep.mubr.bf16.mxu0 0
        %1446 = vmatmul.mubr.bf16.gmra.mrb[0].mxu0 %v1411
        %v1447 = vpop.f32.mrb[0].mxu0
        %v1448 = vadd.f32 %v1396, %v1447
        %v1449 = vpop.f32.mrb[0].mxu0
        %v1450 = vpop.f32.mrb[0].mxu0
        %v1451 = vadd.f32 %v1396, %v1450
        %v1452 = vpop.f32.mrb[0].mxu0
        %1453 = vdwg.mxu0
        %v1454 = vadd.f32 %v762, %v1448
        %v1455 = vadd.f32 %v763, %v1451
        %v1456 = vld [vmem:[#allocation13] sm:$0x1]
        %v1457 = vld [vmem:[%s10] sm:$0x1]
        %v1458 = vsel %vm792, %v1454, 0.0
        %1459 = vadd.xlane.f32.xlu0 %v1458
        %v1460 = vpop.xlane.xlu0 %1459
        %v1461 = vsel %vm792, %v1455, 0.0
        %1462 = vadd.xlane.f32.xlu0 %v1461
        %v1463 = vpop.xlane.xlu0 %1462
        %v1464 = vrcp.pop 32.0
        %v1465 = vmul.f32 %v1460, %v1464
        %v1466 = vmul.f32 %v1463, %v1464
        %v1467 = vsub.f32 %v1454, %v1465
        %v1468 = vsub.f32 %v1455, %v1466
        %v1469 = vmul.f32 %v1467, %v1467
        %v1470 = vmul.f32 %v1468, %v1468
        %v1471 = vsel %vm792, %v1469, 0.0
        %1472 = vadd.xlane.f32.xlu0 %v1471
        %v1473 = vpop.xlane.xlu0 %1472
        %v1474 = vsel %vm792, %v1470, 0.0
        %1475 = vadd.xlane.f32.xlu0 %v1474
        %v1476 = vpop.xlane.xlu0 %1475
        %v1477 = vmul.f32 %v1473, %v1464
        %v1478 = vmul.f32 %v1476, %v1464
        %v1479 = vadd.f32 %v1477, 1e-06
        %v1480 = vadd.f32 %v1478, 1e-06
        %v1481 = vrsqrt.pop %v1479
        %v1482 = vrsqrt.pop %v1480
        %v1483 = vmul.f32 %v1467, %v1481
        %v1484 = vmul.f32 %v1468, %v1482
        %v1486 = vlaneseq
        %v1487 = vshrl.u32 %v1486, 7
        %v1488 = vsub.s32 0, %v1487
        %v1489 = vrot.slane %v1456, %v1488
        %v1491 = vmul.f32 %v1483, %v1489
        %v1492 = vmul.f32 %v1484, %v1489
        %v1494 = vlaneseq
        %v1495 = vshrl.u32 %v1494, 7
        %v1496 = vsub.s32 0, %v1495
        %v1497 = vrot.slane %v1457, %v1496
        %v1499 = vadd.f32 %v1491, %v1497
        %v1500 = vadd.f32 %v1492, %v1497
        %v1501 = vpack.c.bf16 %v1500, %v1499
        %v1502 = vld [vmem:[%s11] sm:$0xf]
        %v1503 = vld [vmem:[%s11 + $0x4] sm:$0xf]
        %v1504 = vld [vmem:[%s11 + $0x8] sm:$0xf]
        %v1505 = vld [vmem:[%s11 + $0xc] sm:$0xf]
        %v1506 = vld [vmem:[%s12] sm:$0x1]
        %v1508 = vlaneseq
        %v1509 = vshrl.u32 %v1508, 7
        %v1510 = vsub.s32 0, %v1509
        %v1511 = vrot.slane %v1506, %v1510
        %v1517 = vunpack.c.l.b16 %v1502
        %v1518 = vunpack.c.l.b16 %v1503
        %v1519 = vunpack.c.l.b16 %v1504
        %v1520 = vunpack.c.l.b16 %v1505
        %v1521 = vpack.c.b16 %v1518, %v1517
        %v1522 = vpack.c.b16 %v1520, %v1519
        %v1526 = vsel %vm792, %v1501, 0
        %1528 = vmatprep.subr.bf16.mxu0 0
        %1529 = vmatpush1.bf16.msra.mxu0 %v1521
        %1530 = vmatprep.subr.bf16.mxu0 0
        %1531 = vmatpush1.bf16.msra.mxu0 %v1522
        %1532 = vmatprep.subr.bf16.mxu0 0
        %1533 = vmatpush1.bf16.msra.mxu0 0
        %1534 = vmatprep.subr.bf16.mxu0 0
        %1535 = vmatpush1.bf16.msra.mxu0 0
        %1536 = vmatprep.subr.bf16.mxu0 0
        %1537 = vmatpush1.bf16.msra.mxu0 0
        %1538 = vmatprep.subr.bf16.mxu0 0
        %1539 = vmatpush1.bf16.msra.mxu0 0
        %1540 = vmatprep.subr.bf16.mxu0 0
        %1541 = vmatpush1.bf16.msra.mxu0 0
        %1542 = vmatprep.subr.bf16.mxu0 0
        %1543 = vmatpush1.bf16.msra.mxu0 0
        %1544 = vmatprep.subr.bf16.mxu0 0
        %1545 = vmatpush1.bf16.msra.mxu0 0
        %1546 = vmatprep.subr.bf16.mxu0 0
        %1547 = vmatpush1.bf16.msra.mxu0 0
        %1548 = vmatprep.subr.bf16.mxu0 0
        %1549 = vmatpush1.bf16.msra.mxu0 0
        %1550 = vmatprep.subr.bf16.mxu0 0
        %1551 = vmatpush1.bf16.msra.mxu0 0
        %1552 = vmatprep.subr.bf16.mxu0 0
        %1553 = vmatpush1.bf16.msra.mxu0 0
        %1554 = vmatprep.subr.bf16.mxu0 0
        %1555 = vmatpush1.bf16.msra.mxu0 0
        %1556 = vmatprep.subr.bf16.mxu0 0
        %1557 = vmatpush1.bf16.msra.mxu0 0
        %1558 = vmatprep.subr.bf16.mxu0 0
        %1559 = vmatpush1.bf16.msra.mxu0 0
        %1560 = vmatprep.mubr.bf16.mxu0 0
        %1561 = vmatmul.mubr.bf16.gmra.mrb[0].mxu0 %v1526
        %v1562 = vpop.f32.mrb[0].mxu0
        %v1563 = vadd.f32 %v1511, %v1562
        %v1564 = vpop.f32.mrb[0].mxu0
        %v1565 = vpop.f32.mrb[0].mxu0
        %v1566 = vadd.f32 %v1511, %v1565
        %v1567 = vpop.f32.mrb[0].mxu0
        %1568 = vdwg.mxu0
        %v1569 = vmul.f32 %v1563, %v1563
        %v1570 = vmul.f32 %v1566, %v1566
        %v1571 = vmul.f32 %v1563, %v1569
        %v1572 = vmul.f32 %v1566, %v1570
        %v1573 = vmul.f32 %v1571, 0.044715
        %v1574 = vmul.f32 %v1572, 0.044715
        %v1575 = vadd.f32 %v1563, %v1573
        %v1576 = vadd.f32 %v1566, %v1574
        %v1577 = vmul.f32 %v1575, 0.7978846
        %v1578 = vmul.f32 %v1576, 0.7978846
        %v1579 = vtanh.pop %v1577
        %v1580 = vtanh.pop %v1578
        %v1581 = vadd.f32 %v1579, 1.0
        %v1582 = vadd.f32 %v1580, 1.0
        %v1583 = vmul.f32 %v1581, 0.5
        %v1584 = vmul.f32 %v1582, 0.5
        %v1585 = vmul.f32 %v1563, %v1583
        %v1586 = vmul.f32 %v1566, %v1584
        %v1587 = vpack.c.bf16 %v1586, %v1585
        %v1588 = vld [vmem:[%s13] sm:$0xf]
        %v1589 = vld [vmem:[%s13 + $0x4] sm:$0xf]
        %v1590 = vld [vmem:[%s13 + $0x8] sm:$0xf]
        %v1591 = vld [vmem:[%s13 + $0xc] sm:$0xf]
        %v1592 = vld [vmem:[%s13 + $0x10] sm:$0xf]
        %v1593 = vld [vmem:[%s13 + $0x14] sm:$0xf]
        %v1594 = vld [vmem:[%s13 + $0x18] sm:$0xf]
        %v1595 = vld [vmem:[%s13 + $0x1c] sm:$0xf]
        %v1596 = vld [vmem:[%s13 + $0x20] sm:$0xf]
        %v1597 = vld [vmem:[%s13 + $0x24] sm:$0xf]
        %v1598 = vld [vmem:[%s13 + $0x28] sm:$0xf]
        %v1599 = vld [vmem:[%s13 + $0x2c] sm:$0xf]
        %v1600 = vld [vmem:[%s13 + $0x30] sm:$0xf]
        %v1601 = vld [vmem:[%s13 + $0x34] sm:$0xf]
        %v1602 = vld [vmem:[%s13 + $0x38] sm:$0xf]
        %v1603 = vld [vmem:[%s13 + $0x3c] sm:$0xf]
        %v1604 = vld [vmem:[%s14] sm:$0x1]
        %v1606 = vlaneseq
        %v1607 = vshrl.u32 %v1606, 7
        %v1608 = vsub.s32 0, %v1607
        %v1609 = vrot.slane %v1604, %v1608
        %v1627 = vunpack.c.l.b16 %v1588
        %v1628 = vunpack.c.l.b16 %v1589
        %v1629 = vunpack.c.l.b16 %v1590
        %v1630 = vunpack.c.l.b16 %v1591
        %v1631 = vunpack.c.l.b16 %v1592
        %v1632 = vunpack.c.l.b16 %v1593
        %v1633 = vunpack.c.l.b16 %v1594
        %v1634 = vunpack.c.l.b16 %v1595
        %v1635 = vunpack.c.l.b16 %v1596
        %v1636 = vunpack.c.l.b16 %v1597
        %v1637 = vunpack.c.l.b16 %v1598
        %v1638 = vunpack.c.l.b16 %v1599
        %v1639 = vunpack.c.l.b16 %v1600
        %v1640 = vunpack.c.l.b16 %v1601
        %v1641 = vunpack.c.l.b16 %v1602
        %v1642 = vunpack.c.l.b16 %v1603
        %v1643 = vpack.c.b16 %v1628, %v1627
        %v1644 = vpack.c.b16 %v1630, %v1629
        %v1645 = vpack.c.b16 %v1632, %v1631
        %v1646 = vpack.c.b16 %v1634, %v1633
        %v1647 = vpack.c.b16 %v1636, %v1635
        %v1648 = vpack.c.b16 %v1638, %v1637
        %v1649 = vpack.c.b16 %v1640, %v1639
        %v1650 = vpack.c.b16 %v1642, %v1641
        %1659 = vmatprep.subr.bf16.mxu0 0
        %1660 = vmatpush1.bf16.msra.mxu0 %v1643
        %1661 = vmatprep.subr.bf16.mxu0 0
        %1662 = vmatpush1.bf16.msra.mxu0 %v1644
        %1663 = vmatprep.subr.bf16.mxu0 0
        %1664 = vmatpush1.bf16.msra.mxu0 %v1645
        %1665 = vmatprep.subr.bf16.mxu0 0
        %1666 = vmatpush1.bf16.msra.mxu0 %v1646
        %1667 = vmatprep.subr.bf16.mxu0 0
        %1668 = vmatpush1.bf16.msra.mxu0 %v1647
        %1669 = vmatprep.subr.bf16.mxu0 0
        %1670 = vmatpush1.bf16.msra.mxu0 %v1648
        %1671 = vmatprep.subr.bf16.mxu0 0
        %1672 = vmatpush1.bf16.msra.mxu0 %v1649
        %1673 = vmatprep.subr.bf16.mxu0 0
        %1674 = vmatpush1.bf16.msra.mxu0 %v1650
        %1675 = vmatprep.subr.bf16.mxu0 0
        %1676 = vmatpush1.bf16.msra.mxu0 0
        %1677 = vmatprep.subr.bf16.mxu0 0
        %1678 = vmatpush1.bf16.msra.mxu0 0
        %1679 = vmatprep.subr.bf16.mxu0 0
        %1680 = vmatpush1.bf16.msra.mxu0 0
        %1681 = vmatprep.subr.bf16.mxu0 0
        %1682 = vmatpush1.bf16.msra.mxu0 0
        %1683 = vmatprep.subr.bf16.mxu0 0
        %1684 = vmatpush1.bf16.msra.mxu0 0
        %1685 = vmatprep.subr.bf16.mxu0 0
        %1686 = vmatpush1.bf16.msra.mxu0 0
        %1687 = vmatprep.subr.bf16.mxu0 0
        %1688 = vmatpush1.bf16.msra.mxu0 0
        %1689 = vmatprep.subr.bf16.mxu0 0
        %1690 = vmatpush1.bf16.msra.mxu0 0
        %1691 = vmatprep.mubr.bf16.mxu0 0
        %1692 = vmatmul.mubr.bf16.gmra.mrb[0].mxu0 %v1587
        %v1693 = vpop.f32.mrb[0].mxu0
        %v1694 = vadd.f32 %v1609, %v1693
        %v1695 = vpop.f32.mrb[0].mxu0
        %v1696 = vpop.f32.mrb[0].mxu0
        %v1697 = vadd.f32 %v1609, %v1696
        %v1698 = vpop.f32.mrb[0].mxu0
        %1699 = vdwg.mxu0
        %v1700 = vadd.f32 %v1454, %v1694
        %v1701 = vadd.f32 %v1455, %v1697
        %1702 = vst.msk [vmem:[%s581] sm:$0xff] %vm792, %v1700
        %1703 = vst.msk [vmem:[%s581 + $0x8] sm:$0xff] %vm792, %v1701
        %s1704 = sand.u32 %s375, 1
        %s1705 = scalar_lea.sflag [#allocation6], %s1704
        %s1706 = sand.u32 %s375, 1
        %s1707 = smul.addr %s1706, 16
        %s1708 = scalar_lea.vmem [#allocation15], %s1707
        // Predicated region
        $region109: #{tpu_custom_call.1} parent=79 // pred_check
          %p1709 = pneg %p385
        $region110: #{tpu_custom_call.1} parent=79 // pred_check_branch
          %1711 = sbr.rel (%p1709) target = $region112
        $region111: #{tpu_custom_call.1} parent=79 // pred_region
          %s1712 = smul.u32 2, %s38
          %s1714 = ssub.s32 256, 256
          %1715 = vsyncadd %s1705, %s1714
          %s1716 = smul.addr %s37, 4
          %s1717 = sadd.s32 %s1712, %s1716
          %s1718 = smul.addr %s1717, 128
          %s1719 = scalar_lea.hbm %s15, %s1718
          %s1720 = sshll.u32 %s1708, 4
          %s1721 = int_to_ptr.vmem [resolvable:$true] %s1720
          %1726 = dma.vmem_to_hbm [thread:$0]  %s1721, 256, %s1719, %s1705, 128, 128, 8
        $region112: #{tpu_custom_call.1} parent=79 // pred_fallthru
          _
      $region80: #{tpu_custom_call.1} parent=5 // pred_fallthru
        _
      %p1727 = scmp.le.s32.totalorder 2, %s28
      // Predicated region
      $region113: #{tpu_custom_call.1} parent=5 // pred_check
        %p1728 = pneg %p1727
      $region114: #{tpu_custom_call.1} parent=5 // pred_check_branch
        %1730 = sbr.rel (%p1728) target = $region116
      $region115: #{tpu_custom_call.1} parent=5 // pred_region
        %s1731 = ssub.s32 %s28, 2
        // Predicated region
        $region117: #{tpu_custom_call.1} parent=115 // pred_check
          %p1732 = pneg %p391
        $region118: #{tpu_custom_call.1} parent=115 // pred_check_branch
          %1734 = sbr.rel (%p1732) target = $region120
        $region119: #{tpu_custom_call.1} parent=115 // pred_region
          %s1735 = sand.u32 %s376, 1
          %s1736 = scalar_lea.sflag [#allocation6], %s1735
          %s1737 = sand.u32 %s376, 1
          %s1738 = smul.addr %s1737, 16
          %s1739 = scalar_lea.vmem [#allocation15], %s1738
          %1740 = dma.done %s1736, 256
        $region120: #{tpu_custom_call.1} parent=115 // pred_fallthru
          _
      $region116: #{tpu_custom_call.1} parent=5 // pred_fallthru
        _
    $region6: #{tpu_custom_call.1} parent=1 // loop_footer
      %s32 = sadd.s32 1, %s28
    $region7: #{tpu_custom_call.1} parent=1 // loop_footer_branch
      %27 = sbr.rel target = $region3
    $region8: #{tpu_custom_call.1} parent=1 // loop_exit
      _
    %1741 = vsyncpa [#allocation5], 1
    %s1742 = scalar_lea.sflag [#allocation5], 1
    %1743 = vsyncpa %s1742, 1
    %1744 = vsyncpa [#allocation8], 1
    %1745 = vsyncpa [#allocation11], 1
    %1746 = vsyncpa [#allocation14], 1
    %1747 = vsyncpa [#allocation6], 1
    %s1748 = scalar_lea.sflag [#allocation6], 1
    %1749 = vsyncpa %s1748, 1

</llo_original>
